<compile_context>
chip_gen: v5e
topology: v5e:2x2
jax: 0.10.0
libtpu: 0.0.40
codegen_flags: <defaults>
</compile_context>

<pallas_src>
import jax
import jax.numpy as jnp
from jax import lax
from jax.experimental import pallas as pl
from jax.experimental.pallas import tpu as pltpu


def _round_up(x, m):
    return (x + m - 1) // m * m


# -----------------------------------------------------------------------------
# Fused kernel: all LSTM layers + FC in one invocation (everything in VMEM)
# -----------------------------------------------------------------------------
def make_fused_rnn_kernel(num_layers, T, Bp, H):
    four_h = 4 * H

    def kernel(*args):
        # inputs
        x_ref = args[0]                                  # (T*Bp, Dp)
        layer_refs = args[1:1 + 3 * num_layers]          # (wih_t, whh_t, b) per layer
        fcw_ref = args[1 + 3 * num_layers]               # (H, Cp)
        fcb_ref = args[2 + 3 * num_layers]               # (1, Cp)
        # output
        out_ref = args[3 + 3 * num_layers]               # (T*Bp, Cp)
        # scratch
        xg_ref = args[4 + 3 * num_layers]                # (T*Bp, 4H) hoisted gates
        ha_ref = args[5 + 3 * num_layers]                # (T*Bp, H)  hidden slab (ping)
        hb_ref = args[6 + 3 * num_layers]                # (T*Bp, H)  hidden slab (pong)

        # Lane mask selecting the "g" (cell candidate) gate inside the packed
        # (Bp, 4H) gate row.  PyTorch gate order: i | f | g | o.
        lane = lax.broadcasted_iota(jnp.int32, (Bp, four_h), 1)
        is_g = jnp.logical_and(lane >= 2 * H, lane < 3 * H)

        in_ref = x_ref
        out_h = ha_ref
        for layer in range(num_layers):
            wih_ref = layer_refs[3 * layer + 0]          # (Din_p, 4H)
            whh_ref = layer_refs[3 * layer + 1]          # (H, 4H)
            b_ref = layer_refs[3 * layer + 2]            # (1, 4H)

            # Hoisted input projection: all timesteps in ONE batched matmul.
            xg_ref[...] = (
                jnp.dot(in_ref[...], wih_ref[...],
                        preferred_element_type=jnp.float32)
                + b_ref[...]
            )

            def step(t, carry, *, whh_ref=whh_ref, out_h=out_h):
                h, c = carry
                row = pl.multiple_of(t * Bp, Bp)
                gates = xg_ref[pl.ds(row, Bp), :] + jnp.dot(
                    h, whh_ref[...], preferred_element_type=jnp.float32)
                # Single full-vreg tanh for all 4 gates:
                #   sigmoid(x) = 0.5 * (tanh(x / 2) + 1)
                pre = jnp.where(is_g, gates, 0.5 * gates)
                th = jnp.tanh(pre)
                act = jnp.where(is_g, th, 0.5 * (th + 1.0))
                i_g = act[:, 0 * H:1 * H]
                f_g = act[:, 1 * H:2 * H]
                g_g = act[:, 2 * H:3 * H]
                o_g = act[:, 3 * H:4 * H]
                c_new = f_g * c + i_g * g_g
                h_new = o_g * jnp.tanh(c_new)
                out_h[pl.ds(row, Bp), :] = h_new
                return (h_new, c_new)

            zero = jnp.zeros((Bp, H), jnp.float32)
            lax.fori_loop(0, T, step, (zero, zero), unroll=True)

            # Next layer consumes this layer's hidden slab (stays in VMEM).
            in_ref = out_h
            out_h = hb_ref if out_h is ha_ref else ha_ref

        # Final Linear on the whole (T*Bp, H) slab; lane-dense (Cp=128) store.
        out_ref[...] = (
            jnp.dot(in_ref[...], fcw_ref[...],
                    preferred_element_type=jnp.float32)
            + fcb_ref[...]
        )

    return kernel


# -----------------------------------------------------------------------------
# Wrapper (pad / repack, single pallas_call, un-pad)
# -----------------------------------------------------------------------------
@jax.jit
def rnn_forward(x_btd, lstm_params, fc_w, fc_b):
    """Equivalent of RNN.forward.  x_btd: (B, T, input_size) -> (B, T, C)."""
    B, T, D = x_btd.shape
    num_layers = len(lstm_params)
    H = lstm_params[0][1].shape[1]         # w_hh: (4H, H)
    C = fc_w.shape[0]

    LANE, SUB = 128, 8
    Bp = _round_up(max(B, SUB), SUB)       # pad batch (sublanes)
    Dp = _round_up(D, LANE)                # pad input features (lanes)
    Cp = _round_up(C, LANE)                # pad num_classes (lanes)

    # time-major + pad, flatten to a (T*Bp, Dp) slab
    x_tbd = jnp.swapaxes(x_btd, 0, 1)                             # (T, B, D)
    x_p = jnp.pad(x_tbd, ((0, 0), (0, Bp - B), (0, Dp - D)))
    x2d = x_p.reshape(T * Bp, Dp)

    args = [x2d]
    for layer, (w_ih, w_hh, b_ih, b_hh) in enumerate(lstm_params):
        d_in = w_ih.shape[1]
        d_in_p = Dp if layer == 0 else d_in
        wih_t = jnp.pad(w_ih.T, ((0, d_in_p - d_in), (0, 0)))     # (Din_p, 4H)
        whh_t = w_hh.T                                            # (H, 4H)
        b_row = (b_ih + b_hh)[None, :]                            # (1, 4H)
        args += [wih_t, whh_t, b_row]

    fcw_t = jnp.pad(fc_w.T, ((0, 0), (0, Cp - C)))                # (H, Cp)
    fcb_row = jnp.pad(fc_b, (0, Cp - C))[None, :]                 # (1, Cp)
    args += [fcw_t, fcb_row]

    vmem = pl.BlockSpec(memory_space=pltpu.MemorySpace.VMEM)
    out2d = pl.pallas_call(
        make_fused_rnn_kernel(num_layers, T, Bp, H),
        out_shape=jax.ShapeDtypeStruct((T * Bp, Cp), jnp.float32),
        in_specs=[vmem] * len(args),
        out_specs=vmem,
        scratch_shapes=[
            pltpu.VMEM((T * Bp, 4 * H), jnp.float32),   # hoisted input gates
            pltpu.VMEM((T * Bp, H), jnp.float32),       # hidden slab (ping)
            pltpu.VMEM((T * Bp, H), jnp.float32),       # hidden slab (pong)
        ],
    )(*args)

    out = out2d.reshape(T, Bp, Cp)[:, :B, :C]                     # un-pad
    return jnp.swapaxes(out, 0, 1)                                # (B, T, C)


# -----------------------------------------------------------------------------
# Pure-JAX reference (for correctness check)
# -----------------------------------------------------------------------------
def rnn_reference(x_btd, lstm_params, fc_w, fc_b):
    h_in = x_btd  # (B, T, D)
    B = x_btd.shape[0]
    for (w_ih, w_hh, b_ih, b_hh) in lstm_params:
        H = w_hh.shape[1]

        def step(carry, x_t):
            h, c = carry
            gates = x_t @ w_ih.T + b_ih + h @ w_hh.T + b_hh
            i, f, g, o = jnp.split(gates, 4, axis=-1)
            i = jax.nn.sigmoid(i)
            f = jax.nn.sigmoid(f)
            g = jnp.tanh(g)
            o = jax.nn.sigmoid(o)
            c = f * c + i * g
            h = o * jnp.tanh(c)
            return (h, c), h

        init = (jnp.zeros((B, H), jnp.float32), jnp.zeros((B, H), jnp.float32))
        _, hs = jax.lax.scan(step, init, jnp.swapaxes(h_in, 0, 1))
        h_in = jnp.swapaxes(hs, 0, 1)
    return h_in @ fc_w.T + fc_b


# -----------------------------------------------------------------------------
# Main
# -----------------------------------------------------------------------------
if __name__ == "__main__":
    input_size = 16
    hidden_size = 32
    num_layers = 2
    num_classes = 10
    batch = 2
    seq = 8

    key = jax.random.PRNGKey(0)
    keys = jax.random.split(key, 4 * num_layers + 3)

    bound = 1.0 / jnp.sqrt(jnp.float32(hidden_size))
    lstm_params = []
    kidx = 0
    for layer in range(num_layers):
        d_in = input_size if layer == 0 else hidden_size
        w_ih = jax.random.uniform(keys[kidx], (4 * hidden_size, d_in),
                                  jnp.float32, -bound, bound); kidx += 1
        w_hh = jax.random.uniform(keys[kidx], (4 * hidden_size, hidden_size),
                                  jnp.float32, -bound, bound); kidx += 1
        b_ih = jax.random.uniform(keys[kidx], (4 * hidden_size,),
                                  jnp.float32, -bound, bound); kidx += 1
        b_hh = jax.random.uniform(keys[kidx], (4 * hidden_size,),
                                  jnp.float32, -bound, bound); kidx += 1
        lstm_params.append((w_ih, w_hh, b_ih, b_hh))

    fc_w = jax.random.uniform(keys[kidx], (num_classes, hidden_size),
                              jnp.float32, -bound, bound); kidx += 1
    fc_b = jax.random.uniform(keys[kidx], (num_classes,),
                              jnp.float32, -bound, bound); kidx += 1

    # (batch, seq, input_size) — batch_first like the PyTorch module.
    x = jax.random.normal(keys[kidx], (batch, seq, input_size), jnp.float32)

    out = rnn_forward(x, tuple(lstm_params), fc_w, fc_b)
    out = jax.block_until_ready(out)

    ref = rnn_reference(x, tuple(lstm_params), fc_w, fc_b)
    assert out.shape == (batch, seq, num_classes), out.shape
    assert jnp.allclose(out, ref, atol=1e-4, rtol=1e-4), \
        float(jnp.max(jnp.abs(out - ref)))

    print("KERNEL_OK")
</pallas_src>

<mosaic_0001>
module attributes {stable_mosaic.version = 11 : i64} {
  func.func @kernel(%arg0: memref<64x128xf32, #tpu.memory_space<vmem>>, %arg1: memref<128x128xf32, #tpu.memory_space<vmem>>, %arg2: memref<32x128xf32, #tpu.memory_space<vmem>>, %arg3: memref<1x128xf32, #tpu.memory_space<vmem>>, %arg4: memref<32x128xf32, #tpu.memory_space<vmem>>, %arg5: memref<32x128xf32, #tpu.memory_space<vmem>>, %arg6: memref<1x128xf32, #tpu.memory_space<vmem>>, %arg7: memref<32x128xf32, #tpu.memory_space<vmem>>, %arg8: memref<1x128xf32, #tpu.memory_space<vmem>>, %arg9: memref<64x128xf32, #tpu.memory_space<vmem>>, %arg10: memref<64x128xf32, #tpu.memory_space<vmem>>, %arg11: memref<64x32xf32, #tpu.memory_space<vmem>>, %arg12: memref<64x32xf32, #tpu.memory_space<vmem>>) attributes {dimension_semantics = [], scalar_prefetch = 0 : i64, scratch_operands = 3 : i64, tpu.core_type = #tpu.core_type<tc>} {
    %0 = tpu.iota {dimensions = array<i32: 1>} : vector<8x128xi32>
    %c64_i32 = arith.constant 64 : i32
    %1 = vector.broadcast %c64_i32 : i32 to vector<8x128xi32>
    %2 = arith.cmpi sge, %0, %1 : vector<8x128xi32>
    %c96_i32 = arith.constant 96 : i32
    %3 = vector.broadcast %c96_i32 : i32 to vector<8x128xi32>
    %4 = arith.cmpi slt, %0, %3 : vector<8x128xi32>
    %5 = arith.andi %2, %4 : vector<8x128xi1>
    %c0 = arith.constant 0 : index
    %c0_0 = arith.constant 0 : index
    %6 = vector.load %arg0[%c0, %c0_0] : memref<64x128xf32, #tpu.memory_space<vmem>>, vector<64x128xf32>
    %c0_1 = arith.constant 0 : index
    %c0_2 = arith.constant 0 : index
    %7 = vector.load %arg1[%c0_1, %c0_2] : memref<128x128xf32, #tpu.memory_space<vmem>>, vector<128x128xf32>
    %cst = arith.constant dense<0.000000e+00> : vector<64x128xf32>
    %8 = tpu.matmul %6, %7, %cst {dimension_numbers = #tpu.dot_dimension_numbers<[1], [0], [0], [1], [0, 0, 1, 1], [], []>} : vector<64x128xf32>, vector<128x128xf32>, vector<64x128xf32> -> vector<64x128xf32>
    %c0_3 = arith.constant 0 : index
    %c0_4 = arith.constant 0 : index
    %9 = vector.load %arg3[%c0_3, %c0_4] : memref<1x128xf32, #tpu.memory_space<vmem>>, vector<1x128xf32>
    %10 = vector.broadcast %9 : vector<1x128xf32> to vector<64x128xf32>
    %11 = arith.addf %8, %10 : vector<64x128xf32>
    %c0_5 = arith.constant 0 : index
    %c0_6 = arith.constant 0 : index
    %12 = vector.load %arg10[%c0_5, %c0_6] : memref<64x128xf32, #tpu.memory_space<vmem>>, vector<64x128xf32>
    tpu.vector_store %arg10[%c0_5, %c0_6], %11 {strides = array<i32>} : memref<64x128xf32, #tpu.memory_space<vmem>>, vector<64x128xf32>,
    %cst_7 = arith.constant 0.000000e+00 : f32
    %13 = vector.broadcast %cst_7 : f32 to vector<8x32xf32>
    %c0_i32 = arith.constant 0 : i32
    %c8_i32 = arith.constant 8 : i32
    %14 = arith.muli %c0_i32, %c8_i32 : i32
    %15 = tpu.assume_multiple %14, 8 : i32
    %16 = arith.index_cast %15 : i32 to index
    %c0_8 = arith.constant 0 : index
    %17 = vector.load %arg10[%16, %c0_8] : memref<64x128xf32, #tpu.memory_space<vmem>>, vector<8x128xf32>
    %c0_9 = arith.constant 0 : index
    %c0_10 = arith.constant 0 : index
    %18 = vector.load %arg2[%c0_9, %c0_10] : memref<32x128xf32, #tpu.memory_space<vmem>>, vector<32x128xf32>
    %cst_11 = arith.constant dense<0.000000e+00> : vector<8x128xf32>
    %19 = tpu.matmul %13, %18, %cst_11 {dimension_numbers = #tpu.dot_dimension_numbers<[1], [0], [0], [1], [0, 0, 1, 1], [], []>} : vector<8x32xf32>, vector<32x128xf32>, vector<8x128xf32> -> vector<8x128xf32>
    %20 = arith.addf %17, %19 : vector<8x128xf32>
    %cst_12 = arith.constant 5.000000e-01 : f32
    %21 = vector.broadcast %cst_12 : f32 to vector<8x128xf32>
    %22 = arith.mulf %21, %20 : vector<8x128xf32>
    %23 = arith.select %5, %20, %22 : vector<8x128xi1>, vector<8x128xf32>
    %24 = math.tanh %23 : vector<8x128xf32>
    %cst_13 = arith.constant 1.000000e+00 : f32
    %25 = vector.broadcast %cst_13 : f32 to vector<8x128xf32>
    %26 = arith.addf %24, %25 : vector<8x128xf32>
    %cst_14 = arith.constant 5.000000e-01 : f32
    %27 = vector.broadcast %cst_14 : f32 to vector<8x128xf32>
    %28 = arith.mulf %27, %26 : vector<8x128xf32>
    %29 = arith.select %5, %24, %28 : vector<8x128xi1>, vector<8x128xf32>
    %30 = vector.extract_strided_slice %29 {offsets = [0, 0], sizes = [8, 32], strides = [1, 1]} : vector<8x128xf32> to vector<8x32xf32>
    %31 = vector.extract_strided_slice %29 {offsets = [0, 32], sizes = [8, 32], strides = [1, 1]} : vector<8x128xf32> to vector<8x32xf32>
    %32 = vector.extract_strided_slice %29 {offsets = [0, 64], sizes = [8, 32], strides = [1, 1]} : vector<8x128xf32> to vector<8x32xf32>
    %33 = vector.extract_strided_slice %29 {offsets = [0, 96], sizes = [8, 32], strides = [1, 1]} : vector<8x128xf32> to vector<8x32xf32>
    %34 = arith.mulf %31, %13 : vector<8x32xf32>
    %35 = arith.mulf %30, %32 : vector<8x32xf32>
    %36 = arith.addf %34, %35 : vector<8x32xf32>
    %37 = math.tanh %36 : vector<8x32xf32>
    %38 = arith.mulf %33, %37 : vector<8x32xf32>
    %39 = arith.index_cast %15 : i32 to index
    %c0_15 = arith.constant 0 : index
    %40 = vector.load %arg11[%39, %c0_15] : memref<64x32xf32, #tpu.memory_space<vmem>>, vector<8x32xf32>
    tpu.vector_store %arg11[%39, %c0_15], %38 {strides = array<i32>} : memref<64x32xf32, #tpu.memory_space<vmem>>, vector<8x32xf32>,
    %c1_i32 = arith.constant 1 : i32
    %c8_i32_16 = arith.constant 8 : i32
    %41 = arith.muli %c1_i32, %c8_i32_16 : i32
    %42 = tpu.assume_multiple %41, 8 : i32
    %43 = arith.index_cast %42 : i32 to index
    %c0_17 = arith.constant 0 : index
    %44 = vector.load %arg10[%43, %c0_17] : memref<64x128xf32, #tpu.memory_space<vmem>>, vector<8x128xf32>
    %c0_18 = arith.constant 0 : index
    %c0_19 = arith.constant 0 : index
    %45 = vector.load %arg2[%c0_18, %c0_19] : memref<32x128xf32, #tpu.memory_space<vmem>>, vector<32x128xf32>
    %cst_20 = arith.constant dense<0.000000e+00> : vector<8x128xf32>
    %46 = tpu.matmul %38, %45, %cst_20 {dimension_numbers = #tpu.dot_dimension_numbers<[1], [0], [0], [1], [0, 0, 1, 1], [], []>} : vector<8x32xf32>, vector<32x128xf32>, vector<8x128xf32> -> vector<8x128xf32>
    %47 = arith.addf %44, %46 : vector<8x128xf32>
    %cst_21 = arith.constant 5.000000e-01 : f32
    %48 = vector.broadcast %cst_21 : f32 to vector<8x128xf32>
    %49 = arith.mulf %48, %47 : vector<8x128xf32>
    %50 = arith.select %5, %47, %49 : vector<8x128xi1>, vector<8x128xf32>
    %51 = math.tanh %50 : vector<8x128xf32>
    %cst_22 = arith.constant 1.000000e+00 : f32
    %52 = vector.broadcast %cst_22 : f32 to vector<8x128xf32>
    %53 = arith.addf %51, %52 : vector<8x128xf32>
    %cst_23 = arith.constant 5.000000e-01 : f32
    %54 = vector.broadcast %cst_23 : f32 to vector<8x128xf32>
    %55 = arith.mulf %54, %53 : vector<8x128xf32>
    %56 = arith.select %5, %51, %55 : vector<8x128xi1>, vector<8x128xf32>
    %57 = vector.extract_strided_slice %56 {offsets = [0, 0], sizes = [8, 32], strides = [1, 1]} : vector<8x128xf32> to vector<8x32xf32>
    %58 = vector.extract_strided_slice %56 {offsets = [0, 32], sizes = [8, 32], strides = [1, 1]} : vector<8x128xf32> to vector<8x32xf32>
    %59 = vector.extract_strided_slice %56 {offsets = [0, 64], sizes = [8, 32], strides = [1, 1]} : vector<8x128xf32> to vector<8x32xf32>
    %60 = vector.extract_strided_slice %56 {offsets = [0, 96], sizes = [8, 32], strides = [1, 1]} : vector<8x128xf32> to vector<8x32xf32>
    %61 = arith.mulf %58, %36 : vector<8x32xf32>
    %62 = arith.mulf %57, %59 : vector<8x32xf32>
    %63 = arith.addf %61, %62 : vector<8x32xf32>
    %64 = math.tanh %63 : vector<8x32xf32>
    %65 = arith.mulf %60, %64 : vector<8x32xf32>
    %66 = arith.index_cast %42 : i32 to index
    %c0_24 = arith.constant 0 : index
    %67 = vector.load %arg11[%66, %c0_24] : memref<64x32xf32, #tpu.memory_space<vmem>>, vector<8x32xf32>
    tpu.vector_store %arg11[%66, %c0_24], %65 {strides = array<i32>} : memref<64x32xf32, #tpu.memory_space<vmem>>, vector<8x32xf32>,
    %c2_i32 = arith.constant 2 : i32
    %c8_i32_25 = arith.constant 8 : i32
    %68 = arith.muli %c2_i32, %c8_i32_25 : i32
    %69 = tpu.assume_multiple %68, 8 : i32
    %70 = arith.index_cast %69 : i32 to index
    %c0_26 = arith.constant 0 : index
    %71 = vector.load %arg10[%70, %c0_26] : memref<64x128xf32, #tpu.memory_space<vmem>>, vector<8x128xf32>
    %c0_27 = arith.constant 0 : index
    %c0_28 = arith.constant 0 : index
    %72 = vector.load %arg2[%c0_27, %c0_28] : memref<32x128xf32, #tpu.memory_space<vmem>>, vector<32x128xf32>
    %cst_29 = arith.constant dense<0.000000e+00> : vector<8x128xf32>
    %73 = tpu.matmul %65, %72, %cst_29 {dimension_numbers = #tpu.dot_dimension_numbers<[1], [0], [0], [1], [0, 0, 1, 1], [], []>} : vector<8x32xf32>, vector<32x128xf32>, vector<8x128xf32> -> vector<8x128xf32>
    %74 = arith.addf %71, %73 : vector<8x128xf32>
    %cst_30 = arith.constant 5.000000e-01 : f32
    %75 = vector.broadcast %cst_30 : f32 to vector<8x128xf32>
    %76 = arith.mulf %75, %74 : vector<8x128xf32>
    %77 = arith.select %5, %74, %76 : vector<8x128xi1>, vector<8x128xf32>
    %78 = math.tanh %77 : vector<8x128xf32>
    %cst_31 = arith.constant 1.000000e+00 : f32
    %79 = vector.broadcast %cst_31 : f32 to vector<8x128xf32>
    %80 = arith.addf %78, %79 : vector<8x128xf32>
    %cst_32 = arith.constant 5.000000e-01 : f32
    %81 = vector.broadcast %cst_32 : f32 to vector<8x128xf32>
    %82 = arith.mulf %81, %80 : vector<8x128xf32>
    %83 = arith.select %5, %78, %82 : vector<8x128xi1>, vector<8x128xf32>
    %84 = vector.extract_strided_slice %83 {offsets = [0, 0], sizes = [8, 32], strides = [1, 1]} : vector<8x128xf32> to vector<8x32xf32>
    %85 = vector.extract_strided_slice %83 {offsets = [0, 32], sizes = [8, 32], strides = [1, 1]} : vector<8x128xf32> to vector<8x32xf32>
    %86 = vector.extract_strided_slice %83 {offsets = [0, 64], sizes = [8, 32], strides = [1, 1]} : vector<8x128xf32> to vector<8x32xf32>
    %87 = vector.extract_strided_slice %83 {offsets = [0, 96], sizes = [8, 32], strides = [1, 1]} : vector<8x128xf32> to vector<8x32xf32>
    %88 = arith.mulf %85, %63 : vector<8x32xf32>
    %89 = arith.mulf %84, %86 : vector<8x32xf32>
    %90 = arith.addf %88, %89 : vector<8x32xf32>
    %91 = math.tanh %90 : vector<8x32xf32>
    %92 = arith.mulf %87, %91 : vector<8x32xf32>
    %93 = arith.index_cast %69 : i32 to index
    %c0_33 = arith.constant 0 : index
    %94 = vector.load %arg11[%93, %c0_33] : memref<64x32xf32, #tpu.memory_space<vmem>>, vector<8x32xf32>
    tpu.vector_store %arg11[%93, %c0_33], %92 {strides = array<i32>} : memref<64x32xf32, #tpu.memory_space<vmem>>, vector<8x32xf32>,
    %c3_i32 = arith.constant 3 : i32
    %c8_i32_34 = arith.constant 8 : i32
    %95 = arith.muli %c3_i32, %c8_i32_34 : i32
    %96 = tpu.assume_multiple %95, 8 : i32
    %97 = arith.index_cast %96 : i32 to index
    %c0_35 = arith.constant 0 : index
    %98 = vector.load %arg10[%97, %c0_35] : memref<64x128xf32, #tpu.memory_space<vmem>>, vector<8x128xf32>
    %c0_36 = arith.constant 0 : index
    %c0_37 = arith.constant 0 : index
    %99 = vector.load %arg2[%c0_36, %c0_37] : memref<32x128xf32, #tpu.memory_space<vmem>>, vector<32x128xf32>
    %cst_38 = arith.constant dense<0.000000e+00> : vector<8x128xf32>
    %100 = tpu.matmul %92, %99, %cst_38 {dimension_numbers = #tpu.dot_dimension_numbers<[1], [0], [0], [1], [0, 0, 1, 1], [], []>} : vector<8x32xf32>, vector<32x128xf32>, vector<8x128xf32> -> vector<8x128xf32>
    %101 = arith.addf %98, %100 : vector<8x128xf32>
    %cst_39 = arith.constant 5.000000e-01 : f32
    %102 = vector.broadcast %cst_39 : f32 to vector<8x128xf32>
    %103 = arith.mulf %102, %101 : vector<8x128xf32>
    %104 = arith.select %5, %101, %103 : vector<8x128xi1>, vector<8x128xf32>
    %105 = math.tanh %104 : vector<8x128xf32>
    %cst_40 = arith.constant 1.000000e+00 : f32
    %106 = vector.broadcast %cst_40 : f32 to vector<8x128xf32>
    %107 = arith.addf %105, %106 : vector<8x128xf32>
    %cst_41 = arith.constant 5.000000e-01 : f32
    %108 = vector.broadcast %cst_41 : f32 to vector<8x128xf32>
    %109 = arith.mulf %108, %107 : vector<8x128xf32>
    %110 = arith.select %5, %105, %109 : vector<8x128xi1>, vector<8x128xf32>
    %111 = vector.extract_strided_slice %110 {offsets = [0, 0], sizes = [8, 32], strides = [1, 1]} : vector<8x128xf32> to vector<8x32xf32>
    %112 = vector.extract_strided_slice %110 {offsets = [0, 32], sizes = [8, 32], strides = [1, 1]} : vector<8x128xf32> to vector<8x32xf32>
    %113 = vector.extract_strided_slice %110 {offsets = [0, 64], sizes = [8, 32], strides = [1, 1]} : vector<8x128xf32> to vector<8x32xf32>
    %114 = vector.extract_strided_slice %110 {offsets = [0, 96], sizes = [8, 32], strides = [1, 1]} : vector<8x128xf32> to vector<8x32xf32>
    %115 = arith.mulf %112, %90 : vector<8x32xf32>
    %116 = arith.mulf %111, %113 : vector<8x32xf32>
    %117 = arith.addf %115, %116 : vector<8x32xf32>
    %118 = math.tanh %117 : vector<8x32xf32>
    %119 = arith.mulf %114, %118 : vector<8x32xf32>
    %120 = arith.index_cast %96 : i32 to index
    %c0_42 = arith.constant 0 : index
    %121 = vector.load %arg11[%120, %c0_42] : memref<64x32xf32, #tpu.memory_space<vmem>>, vector<8x32xf32>
    tpu.vector_store %arg11[%120, %c0_42], %119 {strides = array<i32>} : memref<64x32xf32, #tpu.memory_space<vmem>>, vector<8x32xf32>,
    %c4_i32 = arith.constant 4 : i32
    %c8_i32_43 = arith.constant 8 : i32
    %122 = arith.muli %c4_i32, %c8_i32_43 : i32
    %123 = tpu.assume_multiple %122, 8 : i32
    %124 = arith.index_cast %123 : i32 to index
    %c0_44 = arith.constant 0 : index
    %125 = vector.load %arg10[%124, %c0_44] : memref<64x128xf32, #tpu.memory_space<vmem>>, vector<8x128xf32>
    %c0_45 = arith.constant 0 : index
    %c0_46 = arith.constant 0 : index
    %126 = vector.load %arg2[%c0_45, %c0_46] : memref<32x128xf32, #tpu.memory_space<vmem>>, vector<32x128xf32>
    %cst_47 = arith.constant dense<0.000000e+00> : vector<8x128xf32>
    %127 = tpu.matmul %119, %126, %cst_47 {dimension_numbers = #tpu.dot_dimension_numbers<[1], [0], [0], [1], [0, 0, 1, 1], [], []>} : vector<8x32xf32>, vector<32x128xf32>, vector<8x128xf32> -> vector<8x128xf32>
    %128 = arith.addf %125, %127 : vector<8x128xf32>
    %cst_48 = arith.constant 5.000000e-01 : f32
    %129 = vector.broadcast %cst_48 : f32 to vector<8x128xf32>
    %130 = arith.mulf %129, %128 : vector<8x128xf32>
    %131 = arith.select %5, %128, %130 : vector<8x128xi1>, vector<8x128xf32>
    %132 = math.tanh %131 : vector<8x128xf32>
    %cst_49 = arith.constant 1.000000e+00 : f32
    %133 = vector.broadcast %cst_49 : f32 to vector<8x128xf32>
    %134 = arith.addf %132, %133 : vector<8x128xf32>
    %cst_50 = arith.constant 5.000000e-01 : f32
    %135 = vector.broadcast %cst_50 : f32 to vector<8x128xf32>
    %136 = arith.mulf %135, %134 : vector<8x128xf32>
    %137 = arith.select %5, %132, %136 : vector<8x128xi1>, vector<8x128xf32>
    %138 = vector.extract_strided_slice %137 {offsets = [0, 0], sizes = [8, 32], strides = [1, 1]} : vector<8x128xf32> to vector<8x32xf32>
    %139 = vector.extract_strided_slice %137 {offsets = [0, 32], sizes = [8, 32], strides = [1, 1]} : vector<8x128xf32> to vector<8x32xf32>
    %140 = vector.extract_strided_slice %137 {offsets = [0, 64], sizes = [8, 32], strides = [1, 1]} : vector<8x128xf32> to vector<8x32xf32>
    %141 = vector.extract_strided_slice %137 {offsets = [0, 96], sizes = [8, 32], strides = [1, 1]} : vector<8x128xf32> to vector<8x32xf32>
    %142 = arith.mulf %139, %117 : vector<8x32xf32>
    %143 = arith.mulf %138, %140 : vector<8x32xf32>
    %144 = arith.addf %142, %143 : vector<8x32xf32>
    %145 = math.tanh %144 : vector<8x32xf32>
    %146 = arith.mulf %141, %145 : vector<8x32xf32>
    %147 = arith.index_cast %123 : i32 to index
    %c0_51 = arith.constant 0 : index
    %148 = vector.load %arg11[%147, %c0_51] : memref<64x32xf32, #tpu.memory_space<vmem>>, vector<8x32xf32>
    tpu.vector_store %arg11[%147, %c0_51], %146 {strides = array<i32>} : memref<64x32xf32, #tpu.memory_space<vmem>>, vector<8x32xf32>,
    %c5_i32 = arith.constant 5 : i32
    %c8_i32_52 = arith.constant 8 : i32
    %149 = arith.muli %c5_i32, %c8_i32_52 : i32
    %150 = tpu.assume_multiple %149, 8 : i32
    %151 = arith.index_cast %150 : i32 to index
    %c0_53 = arith.constant 0 : index
    %152 = vector.load %arg10[%151, %c0_53] : memref<64x128xf32, #tpu.memory_space<vmem>>, vector<8x128xf32>
    %c0_54 = arith.constant 0 : index
    %c0_55 = arith.constant 0 : index
    %153 = vector.load %arg2[%c0_54, %c0_55] : memref<32x128xf32, #tpu.memory_space<vmem>>, vector<32x128xf32>
    %cst_56 = arith.constant dense<0.000000e+00> : vector<8x128xf32>
    %154 = tpu.matmul %146, %153, %cst_56 {dimension_numbers = #tpu.dot_dimension_numbers<[1], [0], [0], [1], [0, 0, 1, 1], [], []>} : vector<8x32xf32>, vector<32x128xf32>, vector<8x128xf32> -> vector<8x128xf32>
    %155 = arith.addf %152, %154 : vector<8x128xf32>
    %cst_57 = arith.constant 5.000000e-01 : f32
    %156 = vector.broadcast %cst_57 : f32 to vector<8x128xf32>
    %157 = arith.mulf %156, %155 : vector<8x128xf32>
    %158 = arith.select %5, %155, %157 : vector<8x128xi1>, vector<8x128xf32>
    %159 = math.tanh %158 : vector<8x128xf32>
    %cst_58 = arith.constant 1.000000e+00 : f32
    %160 = vector.broadcast %cst_58 : f32 to vector<8x128xf32>
    %161 = arith.addf %159, %160 : vector<8x128xf32>
    %cst_59 = arith.constant 5.000000e-01 : f32
    %162 = vector.broadcast %cst_59 : f32 to vector<8x128xf32>
    %163 = arith.mulf %162, %161 : vector<8x128xf32>
    %164 = arith.select %5, %159, %163 : vector<8x128xi1>, vector<8x128xf32>
    %165 = vector.extract_strided_slice %164 {offsets = [0, 0], sizes = [8, 32], strides = [1, 1]} : vector<8x128xf32> to vector<8x32xf32>
    %166 = vector.extract_strided_slice %164 {offsets = [0, 32], sizes = [8, 32], strides = [1, 1]} : vector<8x128xf32> to vector<8x32xf32>
    %167 = vector.extract_strided_slice %164 {offsets = [0, 64], sizes = [8, 32], strides = [1, 1]} : vector<8x128xf32> to vector<8x32xf32>
    %168 = vector.extract_strided_slice %164 {offsets = [0, 96], sizes = [8, 32], strides = [1, 1]} : vector<8x128xf32> to vector<8x32xf32>
    %169 = arith.mulf %166, %144 : vector<8x32xf32>
    %170 = arith.mulf %165, %167 : vector<8x32xf32>
    %171 = arith.addf %169, %170 : vector<8x32xf32>
    %172 = math.tanh %171 : vector<8x32xf32>
    %173 = arith.mulf %168, %172 : vector<8x32xf32>
    %174 = arith.index_cast %150 : i32 to index
    %c0_60 = arith.constant 0 : index
    %175 = vector.load %arg11[%174, %c0_60] : memref<64x32xf32, #tpu.memory_space<vmem>>, vector<8x32xf32>
    tpu.vector_store %arg11[%174, %c0_60], %173 {strides = array<i32>} : memref<64x32xf32, #tpu.memory_space<vmem>>, vector<8x32xf32>,
    %c6_i32 = arith.constant 6 : i32
    %c8_i32_61 = arith.constant 8 : i32
    %176 = arith.muli %c6_i32, %c8_i32_61 : i32
    %177 = tpu.assume_multiple %176, 8 : i32
    %178 = arith.index_cast %177 : i32 to index
    %c0_62 = arith.constant 0 : index
    %179 = vector.load %arg10[%178, %c0_62] : memref<64x128xf32, #tpu.memory_space<vmem>>, vector<8x128xf32>
    %c0_63 = arith.constant 0 : index
    %c0_64 = arith.constant 0 : index
    %180 = vector.load %arg2[%c0_63, %c0_64] : memref<32x128xf32, #tpu.memory_space<vmem>>, vector<32x128xf32>
    %cst_65 = arith.constant dense<0.000000e+00> : vector<8x128xf32>
    %181 = tpu.matmul %173, %180, %cst_65 {dimension_numbers = #tpu.dot_dimension_numbers<[1], [0], [0], [1], [0, 0, 1, 1], [], []>} : vector<8x32xf32>, vector<32x128xf32>, vector<8x128xf32> -> vector<8x128xf32>
    %182 = arith.addf %179, %181 : vector<8x128xf32>
    %cst_66 = arith.constant 5.000000e-01 : f32
    %183 = vector.broadcast %cst_66 : f32 to vector<8x128xf32>
    %184 = arith.mulf %183, %182 : vector<8x128xf32>
    %185 = arith.select %5, %182, %184 : vector<8x128xi1>, vector<8x128xf32>
    %186 = math.tanh %185 : vector<8x128xf32>
    %cst_67 = arith.constant 1.000000e+00 : f32
    %187 = vector.broadcast %cst_67 : f32 to vector<8x128xf32>
    %188 = arith.addf %186, %187 : vector<8x128xf32>
    %cst_68 = arith.constant 5.000000e-01 : f32
    %189 = vector.broadcast %cst_68 : f32 to vector<8x128xf32>
    %190 = arith.mulf %189, %188 : vector<8x128xf32>
    %191 = arith.select %5, %186, %190 : vector<8x128xi1>, vector<8x128xf32>
    %192 = vector.extract_strided_slice %191 {offsets = [0, 0], sizes = [8, 32], strides = [1, 1]} : vector<8x128xf32> to vector<8x32xf32>
    %193 = vector.extract_strided_slice %191 {offsets = [0, 32], sizes = [8, 32], strides = [1, 1]} : vector<8x128xf32> to vector<8x32xf32>
    %194 = vector.extract_strided_slice %191 {offsets = [0, 64], sizes = [8, 32], strides = [1, 1]} : vector<8x128xf32> to vector<8x32xf32>
    %195 = vector.extract_strided_slice %191 {offsets = [0, 96], sizes = [8, 32], strides = [1, 1]} : vector<8x128xf32> to vector<8x32xf32>
    %196 = arith.mulf %193, %171 : vector<8x32xf32>
    %197 = arith.mulf %192, %194 : vector<8x32xf32>
    %198 = arith.addf %196, %197 : vector<8x32xf32>
    %199 = math.tanh %198 : vector<8x32xf32>
    %200 = arith.mulf %195, %199 : vector<8x32xf32>
    %201 = arith.index_cast %177 : i32 to index
    %c0_69 = arith.constant 0 : index
    %202 = vector.load %arg11[%201, %c0_69] : memref<64x32xf32, #tpu.memory_space<vmem>>, vector<8x32xf32>
    tpu.vector_store %arg11[%201, %c0_69], %200 {strides = array<i32>} : memref<64x32xf32, #tpu.memory_space<vmem>>, vector<8x32xf32>,
    %c7_i32 = arith.constant 7 : i32
    %c8_i32_70 = arith.constant 8 : i32
    %203 = arith.muli %c7_i32, %c8_i32_70 : i32
    %204 = tpu.assume_multiple %203, 8 : i32
    %205 = arith.index_cast %204 : i32 to index
    %c0_71 = arith.constant 0 : index
    %206 = vector.load %arg10[%205, %c0_71] : memref<64x128xf32, #tpu.memory_space<vmem>>, vector<8x128xf32>
    %c0_72 = arith.constant 0 : index
    %c0_73 = arith.constant 0 : index
    %207 = vector.load %arg2[%c0_72, %c0_73] : memref<32x128xf32, #tpu.memory_space<vmem>>, vector<32x128xf32>
    %cst_74 = arith.constant dense<0.000000e+00> : vector<8x128xf32>
    %208 = tpu.matmul %200, %207, %cst_74 {dimension_numbers = #tpu.dot_dimension_numbers<[1], [0], [0], [1], [0, 0, 1, 1], [], []>} : vector<8x32xf32>, vector<32x128xf32>, vector<8x128xf32> -> vector<8x128xf32>
    %209 = arith.addf %206, %208 : vector<8x128xf32>
    %cst_75 = arith.constant 5.000000e-01 : f32
    %210 = vector.broadcast %cst_75 : f32 to vector<8x128xf32>
    %211 = arith.mulf %210, %209 : vector<8x128xf32>
    %212 = arith.select %5, %209, %211 : vector<8x128xi1>, vector<8x128xf32>
    %213 = math.tanh %212 : vector<8x128xf32>
    %cst_76 = arith.constant 1.000000e+00 : f32
    %214 = vector.broadcast %cst_76 : f32 to vector<8x128xf32>
    %215 = arith.addf %213, %214 : vector<8x128xf32>
    %cst_77 = arith.constant 5.000000e-01 : f32
    %216 = vector.broadcast %cst_77 : f32 to vector<8x128xf32>
    %217 = arith.mulf %216, %215 : vector<8x128xf32>
    %218 = arith.select %5, %213, %217 : vector<8x128xi1>, vector<8x128xf32>
    %219 = vector.extract_strided_slice %218 {offsets = [0, 0], sizes = [8, 32], strides = [1, 1]} : vector<8x128xf32> to vector<8x32xf32>
    %220 = vector.extract_strided_slice %218 {offsets = [0, 32], sizes = [8, 32], strides = [1, 1]} : vector<8x128xf32> to vector<8x32xf32>
    %221 = vector.extract_strided_slice %218 {offsets = [0, 64], sizes = [8, 32], strides = [1, 1]} : vector<8x128xf32> to vector<8x32xf32>
    %222 = vector.extract_strided_slice %218 {offsets = [0, 96], sizes = [8, 32], strides = [1, 1]} : vector<8x128xf32> to vector<8x32xf32>
    %223 = arith.mulf %220, %198 : vector<8x32xf32>
    %224 = arith.mulf %219, %221 : vector<8x32xf32>
    %225 = arith.addf %223, %224 : vector<8x32xf32>
    %226 = math.tanh %225 : vector<8x32xf32>
    %227 = arith.mulf %222, %226 : vector<8x32xf32>
    %228 = arith.index_cast %204 : i32 to index
    %c0_78 = arith.constant 0 : index
    %229 = vector.load %arg11[%228, %c0_78] : memref<64x32xf32, #tpu.memory_space<vmem>>, vector<8x32xf32>
    tpu.vector_store %arg11[%228, %c0_78], %227 {strides = array<i32>} : memref<64x32xf32, #tpu.memory_space<vmem>>, vector<8x32xf32>,
    %c8_i32_79 = arith.constant 8 : i32
    %c0_80 = arith.constant 0 : index
    %c0_81 = arith.constant 0 : index
    %230 = vector.load %arg11[%c0_80, %c0_81] : memref<64x32xf32, #tpu.memory_space<vmem>>, vector<64x32xf32>
    %c0_82 = arith.constant 0 : index
    %c0_83 = arith.constant 0 : index
    %231 = vector.load %arg4[%c0_82, %c0_83] : memref<32x128xf32, #tpu.memory_space<vmem>>, vector<32x128xf32>
    %cst_84 = arith.constant dense<0.000000e+00> : vector<64x128xf32>
    %232 = tpu.matmul %230, %231, %cst_84 {dimension_numbers = #tpu.dot_dimension_numbers<[1], [0], [0], [1], [0, 0, 1, 1], [], []>} : vector<64x32xf32>, vector<32x128xf32>, vector<64x128xf32> -> vector<64x128xf32>
    %c0_85 = arith.constant 0 : index
    %c0_86 = arith.constant 0 : index
    %233 = vector.load %arg6[%c0_85, %c0_86] : memref<1x128xf32, #tpu.memory_space<vmem>>, vector<1x128xf32>
    %234 = vector.broadcast %233 : vector<1x128xf32> to vector<64x128xf32>
    %235 = arith.addf %232, %234 : vector<64x128xf32>
    %c0_87 = arith.constant 0 : index
    %c0_88 = arith.constant 0 : index
    %236 = vector.load %arg10[%c0_87, %c0_88] : memref<64x128xf32, #tpu.memory_space<vmem>>, vector<64x128xf32>
    tpu.vector_store %arg10[%c0_87, %c0_88], %235 {strides = array<i32>} : memref<64x128xf32, #tpu.memory_space<vmem>>, vector<64x128xf32>,
    %cst_89 = arith.constant 0.000000e+00 : f32
    %237 = vector.broadcast %cst_89 : f32 to vector<8x32xf32>
    %c0_i32_90 = arith.constant 0 : i32
    %c8_i32_91 = arith.constant 8 : i32
    %238 = arith.muli %c0_i32_90, %c8_i32_91 : i32
    %239 = tpu.assume_multiple %238, 8 : i32
    %240 = arith.index_cast %239 : i32 to index
    %c0_92 = arith.constant 0 : index
    %241 = vector.load %arg10[%240, %c0_92] : memref<64x128xf32, #tpu.memory_space<vmem>>, vector<8x128xf32>
    %c0_93 = arith.constant 0 : index
    %c0_94 = arith.constant 0 : index
    %242 = vector.load %arg5[%c0_93, %c0_94] : memref<32x128xf32, #tpu.memory_space<vmem>>, vector<32x128xf32>
    %cst_95 = arith.constant dense<0.000000e+00> : vector<8x128xf32>
    %243 = tpu.matmul %237, %242, %cst_95 {dimension_numbers = #tpu.dot_dimension_numbers<[1], [0], [0], [1], [0, 0, 1, 1], [], []>} : vector<8x32xf32>, vector<32x128xf32>, vector<8x128xf32> -> vector<8x128xf32>
    %244 = arith.addf %241, %243 : vector<8x128xf32>
    %cst_96 = arith.constant 5.000000e-01 : f32
    %245 = vector.broadcast %cst_96 : f32 to vector<8x128xf32>
    %246 = arith.mulf %245, %244 : vector<8x128xf32>
    %247 = arith.select %5, %244, %246 : vector<8x128xi1>, vector<8x128xf32>
    %248 = math.tanh %247 : vector<8x128xf32>
    %cst_97 = arith.constant 1.000000e+00 : f32
    %249 = vector.broadcast %cst_97 : f32 to vector<8x128xf32>
    %250 = arith.addf %248, %249 : vector<8x128xf32>
    %cst_98 = arith.constant 5.000000e-01 : f32
    %251 = vector.broadcast %cst_98 : f32 to vector<8x128xf32>
    %252 = arith.mulf %251, %250 : vector<8x128xf32>
    %253 = arith.select %5, %248, %252 : vector<8x128xi1>, vector<8x128xf32>
    %254 = vector.extract_strided_slice %253 {offsets = [0, 0], sizes = [8, 32], strides = [1, 1]} : vector<8x128xf32> to vector<8x32xf32>
    %255 = vector.extract_strided_slice %253 {offsets = [0, 32], sizes = [8, 32], strides = [1, 1]} : vector<8x128xf32> to vector<8x32xf32>
    %256 = vector.extract_strided_slice %253 {offsets = [0, 64], sizes = [8, 32], strides = [1, 1]} : vector<8x128xf32> to vector<8x32xf32>
    %257 = vector.extract_strided_slice %253 {offsets = [0, 96], sizes = [8, 32], strides = [1, 1]} : vector<8x128xf32> to vector<8x32xf32>
    %258 = arith.mulf %255, %237 : vector<8x32xf32>
    %259 = arith.mulf %254, %256 : vector<8x32xf32>
    %260 = arith.addf %258, %259 : vector<8x32xf32>
    %261 = math.tanh %260 : vector<8x32xf32>
    %262 = arith.mulf %257, %261 : vector<8x32xf32>
    %263 = arith.index_cast %239 : i32 to index
    %c0_99 = arith.constant 0 : index
    %264 = vector.load %arg12[%263, %c0_99] : memref<64x32xf32, #tpu.memory_space<vmem>>, vector<8x32xf32>
    tpu.vector_store %arg12[%263, %c0_99], %262 {strides = array<i32>} : memref<64x32xf32, #tpu.memory_space<vmem>>, vector<8x32xf32>,
    %c1_i32_100 = arith.constant 1 : i32
    %c8_i32_101 = arith.constant 8 : i32
    %265 = arith.muli %c1_i32_100, %c8_i32_101 : i32
    %266 = tpu.assume_multiple %265, 8 : i32
    %267 = arith.index_cast %266 : i32 to index
    %c0_102 = arith.constant 0 : index
    %268 = vector.load %arg10[%267, %c0_102] : memref<64x128xf32, #tpu.memory_space<vmem>>, vector<8x128xf32>
    %c0_103 = arith.constant 0 : index
    %c0_104 = arith.constant 0 : index
    %269 = vector.load %arg5[%c0_103, %c0_104] : memref<32x128xf32, #tpu.memory_space<vmem>>, vector<32x128xf32>
    %cst_105 = arith.constant dense<0.000000e+00> : vector<8x128xf32>
    %270 = tpu.matmul %262, %269, %cst_105 {dimension_numbers = #tpu.dot_dimension_numbers<[1], [0], [0], [1], [0, 0, 1, 1], [], []>} : vector<8x32xf32>, vector<32x128xf32>, vector<8x128xf32> -> vector<8x128xf32>
    %271 = arith.addf %268, %270 : vector<8x128xf32>
    %cst_106 = arith.constant 5.000000e-01 : f32
    %272 = vector.broadcast %cst_106 : f32 to vector<8x128xf32>
    %273 = arith.mulf %272, %271 : vector<8x128xf32>
    %274 = arith.select %5, %271, %273 : vector<8x128xi1>, vector<8x128xf32>
    %275 = math.tanh %274 : vector<8x128xf32>
    %cst_107 = arith.constant 1.000000e+00 : f32
    %276 = vector.broadcast %cst_107 : f32 to vector<8x128xf32>
    %277 = arith.addf %275, %276 : vector<8x128xf32>
    %cst_108 = arith.constant 5.000000e-01 : f32
    %278 = vector.broadcast %cst_108 : f32 to vector<8x128xf32>
    %279 = arith.mulf %278, %277 : vector<8x128xf32>
    %280 = arith.select %5, %275, %279 : vector<8x128xi1>, vector<8x128xf32>
    %281 = vector.extract_strided_slice %280 {offsets = [0, 0], sizes = [8, 32], strides = [1, 1]} : vector<8x128xf32> to vector<8x32xf32>
    %282 = vector.extract_strided_slice %280 {offsets = [0, 32], sizes = [8, 32], strides = [1, 1]} : vector<8x128xf32> to vector<8x32xf32>
    %283 = vector.extract_strided_slice %280 {offsets = [0, 64], sizes = [8, 32], strides = [1, 1]} : vector<8x128xf32> to vector<8x32xf32>
    %284 = vector.extract_strided_slice %280 {offsets = [0, 96], sizes = [8, 32], strides = [1, 1]} : vector<8x128xf32> to vector<8x32xf32>
    %285 = arith.mulf %282, %260 : vector<8x32xf32>
    %286 = arith.mulf %281, %283 : vector<8x32xf32>
    %287 = arith.addf %285, %286 : vector<8x32xf32>
    %288 = math.tanh %287 : vector<8x32xf32>
    %289 = arith.mulf %284, %288 : vector<8x32xf32>
    %290 = arith.index_cast %266 : i32 to index
    %c0_109 = arith.constant 0 : index
    %291 = vector.load %arg12[%290, %c0_109] : memref<64x32xf32, #tpu.memory_space<vmem>>, vector<8x32xf32>
    tpu.vector_store %arg12[%290, %c0_109], %289 {strides = array<i32>} : memref<64x32xf32, #tpu.memory_space<vmem>>, vector<8x32xf32>,
    %c2_i32_110 = arith.constant 2 : i32
    %c8_i32_111 = arith.constant 8 : i32
    %292 = arith.muli %c2_i32_110, %c8_i32_111 : i32
    %293 = tpu.assume_multiple %292, 8 : i32
    %294 = arith.index_cast %293 : i32 to index
    %c0_112 = arith.constant 0 : index
    %295 = vector.load %arg10[%294, %c0_112] : memref<64x128xf32, #tpu.memory_space<vmem>>, vector<8x128xf32>
    %c0_113 = arith.constant 0 : index
    %c0_114 = arith.constant 0 : index
    %296 = vector.load %arg5[%c0_113, %c0_114] : memref<32x128xf32, #tpu.memory_space<vmem>>, vector<32x128xf32>
    %cst_115 = arith.constant dense<0.000000e+00> : vector<8x128xf32>
    %297 = tpu.matmul %289, %296, %cst_115 {dimension_numbers = #tpu.dot_dimension_numbers<[1], [0], [0], [1], [0, 0, 1, 1], [], []>} : vector<8x32xf32>, vector<32x128xf32>, vector<8x128xf32> -> vector<8x128xf32>
    %298 = arith.addf %295, %297 : vector<8x128xf32>
    %cst_116 = arith.constant 5.000000e-01 : f32
    %299 = vector.broadcast %cst_116 : f32 to vector<8x128xf32>
    %300 = arith.mulf %299, %298 : vector<8x128xf32>
    %301 = arith.select %5, %298, %300 : vector<8x128xi1>, vector<8x128xf32>
    %302 = math.tanh %301 : vector<8x128xf32>
    %cst_117 = arith.constant 1.000000e+00 : f32
    %303 = vector.broadcast %cst_117 : f32 to vector<8x128xf32>
    %304 = arith.addf %302, %303 : vector<8x128xf32>
    %cst_118 = arith.constant 5.000000e-01 : f32
    %305 = vector.broadcast %cst_118 : f32 to vector<8x128xf32>
    %306 = arith.mulf %305, %304 : vector<8x128xf32>
    %307 = arith.select %5, %302, %306 : vector<8x128xi1>, vector<8x128xf32>
    %308 = vector.extract_strided_slice %307 {offsets = [0, 0], sizes = [8, 32], strides = [1, 1]} : vector<8x128xf32> to vector<8x32xf32>
    %309 = vector.extract_strided_slice %307 {offsets = [0, 32], sizes = [8, 32], strides = [1, 1]} : vector<8x128xf32> to vector<8x32xf32>
    %310 = vector.extract_strided_slice %307 {offsets = [0, 64], sizes = [8, 32], strides = [1, 1]} : vector<8x128xf32> to vector<8x32xf32>
    %311 = vector.extract_strided_slice %307 {offsets = [0, 96], sizes = [8, 32], strides = [1, 1]} : vector<8x128xf32> to vector<8x32xf32>
    %312 = arith.mulf %309, %287 : vector<8x32xf32>
    %313 = arith.mulf %308, %310 : vector<8x32xf32>
    %314 = arith.addf %312, %313 : vector<8x32xf32>
    %315 = math.tanh %314 : vector<8x32xf32>
    %316 = arith.mulf %311, %315 : vector<8x32xf32>
    %317 = arith.index_cast %293 : i32 to index
    %c0_119 = arith.constant 0 : index
    %318 = vector.load %arg12[%317, %c0_119] : memref<64x32xf32, #tpu.memory_space<vmem>>, vector<8x32xf32>
    tpu.vector_store %arg12[%317, %c0_119], %316 {strides = array<i32>} : memref<64x32xf32, #tpu.memory_space<vmem>>, vector<8x32xf32>,
    %c3_i32_120 = arith.constant 3 : i32
    %c8_i32_121 = arith.constant 8 : i32
    %319 = arith.muli %c3_i32_120, %c8_i32_121 : i32
    %320 = tpu.assume_multiple %319, 8 : i32
    %321 = arith.index_cast %320 : i32 to index
    %c0_122 = arith.constant 0 : index
    %322 = vector.load %arg10[%321, %c0_122] : memref<64x128xf32, #tpu.memory_space<vmem>>, vector<8x128xf32>
    %c0_123 = arith.constant 0 : index
    %c0_124 = arith.constant 0 : index
    %323 = vector.load %arg5[%c0_123, %c0_124] : memref<32x128xf32, #tpu.memory_space<vmem>>, vector<32x128xf32>
    %cst_125 = arith.constant dense<0.000000e+00> : vector<8x128xf32>
    %324 = tpu.matmul %316, %323, %cst_125 {dimension_numbers = #tpu.dot_dimension_numbers<[1], [0], [0], [1], [0, 0, 1, 1], [], []>} : vector<8x32xf32>, vector<32x128xf32>, vector<8x128xf32> -> vector<8x128xf32>
    %325 = arith.addf %322, %324 : vector<8x128xf32>
    %cst_126 = arith.constant 5.000000e-01 : f32
    %326 = vector.broadcast %cst_126 : f32 to vector<8x128xf32>
    %327 = arith.mulf %326, %325 : vector<8x128xf32>
    %328 = arith.select %5, %325, %327 : vector<8x128xi1>, vector<8x128xf32>
    %329 = math.tanh %328 : vector<8x128xf32>
    %cst_127 = arith.constant 1.000000e+00 : f32
    %330 = vector.broadcast %cst_127 : f32 to vector<8x128xf32>
    %331 = arith.addf %329, %330 : vector<8x128xf32>
    %cst_128 = arith.constant 5.000000e-01 : f32
    %332 = vector.broadcast %cst_128 : f32 to vector<8x128xf32>
    %333 = arith.mulf %332, %331 : vector<8x128xf32>
    %334 = arith.select %5, %329, %333 : vector<8x128xi1>, vector<8x128xf32>
    %335 = vector.extract_strided_slice %334 {offsets = [0, 0], sizes = [8, 32], strides = [1, 1]} : vector<8x128xf32> to vector<8x32xf32>
    %336 = vector.extract_strided_slice %334 {offsets = [0, 32], sizes = [8, 32], strides = [1, 1]} : vector<8x128xf32> to vector<8x32xf32>
    %337 = vector.extract_strided_slice %334 {offsets = [0, 64], sizes = [8, 32], strides = [1, 1]} : vector<8x128xf32> to vector<8x32xf32>
    %338 = vector.extract_strided_slice %334 {offsets = [0, 96], sizes = [8, 32], strides = [1, 1]} : vector<8x128xf32> to vector<8x32xf32>
    %339 = arith.mulf %336, %314 : vector<8x32xf32>
    %340 = arith.mulf %335, %337 : vector<8x32xf32>
    %341 = arith.addf %339, %340 : vector<8x32xf32>
    %342 = math.tanh %341 : vector<8x32xf32>
    %343 = arith.mulf %338, %342 : vector<8x32xf32>
    %344 = arith.index_cast %320 : i32 to index
    %c0_129 = arith.constant 0 : index
    %345 = vector.load %arg12[%344, %c0_129] : memref<64x32xf32, #tpu.memory_space<vmem>>, vector<8x32xf32>
    tpu.vector_store %arg12[%344, %c0_129], %343 {strides = array<i32>} : memref<64x32xf32, #tpu.memory_space<vmem>>, vector<8x32xf32>,
    %c4_i32_130 = arith.constant 4 : i32
    %c8_i32_131 = arith.constant 8 : i32
    %346 = arith.muli %c4_i32_130, %c8_i32_131 : i32
    %347 = tpu.assume_multiple %346, 8 : i32
    %348 = arith.index_cast %347 : i32 to index
    %c0_132 = arith.constant 0 : index
    %349 = vector.load %arg10[%348, %c0_132] : memref<64x128xf32, #tpu.memory_space<vmem>>, vector<8x128xf32>
    %c0_133 = arith.constant 0 : index
    %c0_134 = arith.constant 0 : index
    %350 = vector.load %arg5[%c0_133, %c0_134] : memref<32x128xf32, #tpu.memory_space<vmem>>, vector<32x128xf32>
    %cst_135 = arith.constant dense<0.000000e+00> : vector<8x128xf32>
    %351 = tpu.matmul %343, %350, %cst_135 {dimension_numbers = #tpu.dot_dimension_numbers<[1], [0], [0], [1], [0, 0, 1, 1], [], []>} : vector<8x32xf32>, vector<32x128xf32>, vector<8x128xf32> -> vector<8x128xf32>
    %352 = arith.addf %349, %351 : vector<8x128xf32>
    %cst_136 = arith.constant 5.000000e-01 : f32
    %353 = vector.broadcast %cst_136 : f32 to vector<8x128xf32>
    %354 = arith.mulf %353, %352 : vector<8x128xf32>
    %355 = arith.select %5, %352, %354 : vector<8x128xi1>, vector<8x128xf32>
    %356 = math.tanh %355 : vector<8x128xf32>
    %cst_137 = arith.constant 1.000000e+00 : f32
    %357 = vector.broadcast %cst_137 : f32 to vector<8x128xf32>
    %358 = arith.addf %356, %357 : vector<8x128xf32>
    %cst_138 = arith.constant 5.000000e-01 : f32
    %359 = vector.broadcast %cst_138 : f32 to vector<8x128xf32>
    %360 = arith.mulf %359, %358 : vector<8x128xf32>
    %361 = arith.select %5, %356, %360 : vector<8x128xi1>, vector<8x128xf32>
    %362 = vector.extract_strided_slice %361 {offsets = [0, 0], sizes = [8, 32], strides = [1, 1]} : vector<8x128xf32> to vector<8x32xf32>
    %363 = vector.extract_strided_slice %361 {offsets = [0, 32], sizes = [8, 32], strides = [1, 1]} : vector<8x128xf32> to vector<8x32xf32>
    %364 = vector.extract_strided_slice %361 {offsets = [0, 64], sizes = [8, 32], strides = [1, 1]} : vector<8x128xf32> to vector<8x32xf32>
    %365 = vector.extract_strided_slice %361 {offsets = [0, 96], sizes = [8, 32], strides = [1, 1]} : vector<8x128xf32> to vector<8x32xf32>
    %366 = arith.mulf %363, %341 : vector<8x32xf32>
    %367 = arith.mulf %362, %364 : vector<8x32xf32>
    %368 = arith.addf %366, %367 : vector<8x32xf32>
    %369 = math.tanh %368 : vector<8x32xf32>
    %370 = arith.mulf %365, %369 : vector<8x32xf32>
    %371 = arith.index_cast %347 : i32 to index
    %c0_139 = arith.constant 0 : index
    %372 = vector.load %arg12[%371, %c0_139] : memref<64x32xf32, #tpu.memory_space<vmem>>, vector<8x32xf32>
    tpu.vector_store %arg12[%371, %c0_139], %370 {strides = array<i32>} : memref<64x32xf32, #tpu.memory_space<vmem>>, vector<8x32xf32>,
    %c5_i32_140 = arith.constant 5 : i32
    %c8_i32_141 = arith.constant 8 : i32
    %373 = arith.muli %c5_i32_140, %c8_i32_141 : i32
    %374 = tpu.assume_multiple %373, 8 : i32
    %375 = arith.index_cast %374 : i32 to index
    %c0_142 = arith.constant 0 : index
    %376 = vector.load %arg10[%375, %c0_142] : memref<64x128xf32, #tpu.memory_space<vmem>>, vector<8x128xf32>
    %c0_143 = arith.constant 0 : index
    %c0_144 = arith.constant 0 : index
    %377 = vector.load %arg5[%c0_143, %c0_144] : memref<32x128xf32, #tpu.memory_space<vmem>>, vector<32x128xf32>
    %cst_145 = arith.constant dense<0.000000e+00> : vector<8x128xf32>
    %378 = tpu.matmul %370, %377, %cst_145 {dimension_numbers = #tpu.dot_dimension_numbers<[1], [0], [0], [1], [0, 0, 1, 1], [], []>} : vector<8x32xf32>, vector<32x128xf32>, vector<8x128xf32> -> vector<8x128xf32>
    %379 = arith.addf %376, %378 : vector<8x128xf32>
    %cst_146 = arith.constant 5.000000e-01 : f32
    %380 = vector.broadcast %cst_146 : f32 to vector<8x128xf32>
    %381 = arith.mulf %380, %379 : vector<8x128xf32>
    %382 = arith.select %5, %379, %381 : vector<8x128xi1>, vector<8x128xf32>
    %383 = math.tanh %382 : vector<8x128xf32>
    %cst_147 = arith.constant 1.000000e+00 : f32
    %384 = vector.broadcast %cst_147 : f32 to vector<8x128xf32>
    %385 = arith.addf %383, %384 : vector<8x128xf32>
    %cst_148 = arith.constant 5.000000e-01 : f32
    %386 = vector.broadcast %cst_148 : f32 to vector<8x128xf32>
    %387 = arith.mulf %386, %385 : vector<8x128xf32>
    %388 = arith.select %5, %383, %387 : vector<8x128xi1>, vector<8x128xf32>
    %389 = vector.extract_strided_slice %388 {offsets = [0, 0], sizes = [8, 32], strides = [1, 1]} : vector<8x128xf32> to vector<8x32xf32>
    %390 = vector.extract_strided_slice %388 {offsets = [0, 32], sizes = [8, 32], strides = [1, 1]} : vector<8x128xf32> to vector<8x32xf32>
    %391 = vector.extract_strided_slice %388 {offsets = [0, 64], sizes = [8, 32], strides = [1, 1]} : vector<8x128xf32> to vector<8x32xf32>
    %392 = vector.extract_strided_slice %388 {offsets = [0, 96], sizes = [8, 32], strides = [1, 1]} : vector<8x128xf32> to vector<8x32xf32>
    %393 = arith.mulf %390, %368 : vector<8x32xf32>
    %394 = arith.mulf %389, %391 : vector<8x32xf32>
    %395 = arith.addf %393, %394 : vector<8x32xf32>
    %396 = math.tanh %395 : vector<8x32xf32>
    %397 = arith.mulf %392, %396 : vector<8x32xf32>
    %398 = arith.index_cast %374 : i32 to index
    %c0_149 = arith.constant 0 : index
    %399 = vector.load %arg12[%398, %c0_149] : memref<64x32xf32, #tpu.memory_space<vmem>>, vector<8x32xf32>
    tpu.vector_store %arg12[%398, %c0_149], %397 {strides = array<i32>} : memref<64x32xf32, #tpu.memory_space<vmem>>, vector<8x32xf32>,
    %c6_i32_150 = arith.constant 6 : i32
    %c8_i32_151 = arith.constant 8 : i32
    %400 = arith.muli %c6_i32_150, %c8_i32_151 : i32
    %401 = tpu.assume_multiple %400, 8 : i32
    %402 = arith.index_cast %401 : i32 to index
    %c0_152 = arith.constant 0 : index
    %403 = vector.load %arg10[%402, %c0_152] : memref<64x128xf32, #tpu.memory_space<vmem>>, vector<8x128xf32>
    %c0_153 = arith.constant 0 : index
    %c0_154 = arith.constant 0 : index
    %404 = vector.load %arg5[%c0_153, %c0_154] : memref<32x128xf32, #tpu.memory_space<vmem>>, vector<32x128xf32>
    %cst_155 = arith.constant dense<0.000000e+00> : vector<8x128xf32>
    %405 = tpu.matmul %397, %404, %cst_155 {dimension_numbers = #tpu.dot_dimension_numbers<[1], [0], [0], [1], [0, 0, 1, 1], [], []>} : vector<8x32xf32>, vector<32x128xf32>, vector<8x128xf32> -> vector<8x128xf32>
    %406 = arith.addf %403, %405 : vector<8x128xf32>
    %cst_156 = arith.constant 5.000000e-01 : f32
    %407 = vector.broadcast %cst_156 : f32 to vector<8x128xf32>
    %408 = arith.mulf %407, %406 : vector<8x128xf32>
    %409 = arith.select %5, %406, %408 : vector<8x128xi1>, vector<8x128xf32>
    %410 = math.tanh %409 : vector<8x128xf32>
    %cst_157 = arith.constant 1.000000e+00 : f32
    %411 = vector.broadcast %cst_157 : f32 to vector<8x128xf32>
    %412 = arith.addf %410, %411 : vector<8x128xf32>
    %cst_158 = arith.constant 5.000000e-01 : f32
    %413 = vector.broadcast %cst_158 : f32 to vector<8x128xf32>
    %414 = arith.mulf %413, %412 : vector<8x128xf32>
    %415 = arith.select %5, %410, %414 : vector<8x128xi1>, vector<8x128xf32>
    %416 = vector.extract_strided_slice %415 {offsets = [0, 0], sizes = [8, 32], strides = [1, 1]} : vector<8x128xf32> to vector<8x32xf32>
    %417 = vector.extract_strided_slice %415 {offsets = [0, 32], sizes = [8, 32], strides = [1, 1]} : vector<8x128xf32> to vector<8x32xf32>
    %418 = vector.extract_strided_slice %415 {offsets = [0, 64], sizes = [8, 32], strides = [1, 1]} : vector<8x128xf32> to vector<8x32xf32>
    %419 = vector.extract_strided_slice %415 {offsets = [0, 96], sizes = [8, 32], strides = [1, 1]} : vector<8x128xf32> to vector<8x32xf32>
    %420 = arith.mulf %417, %395 : vector<8x32xf32>
    %421 = arith.mulf %416, %418 : vector<8x32xf32>
    %422 = arith.addf %420, %421 : vector<8x32xf32>
    %423 = math.tanh %422 : vector<8x32xf32>
    %424 = arith.mulf %419, %423 : vector<8x32xf32>
    %425 = arith.index_cast %401 : i32 to index
    %c0_159 = arith.constant 0 : index
    %426 = vector.load %arg12[%425, %c0_159] : memref<64x32xf32, #tpu.memory_space<vmem>>, vector<8x32xf32>
    tpu.vector_store %arg12[%425, %c0_159], %424 {strides = array<i32>} : memref<64x32xf32, #tpu.memory_space<vmem>>, vector<8x32xf32>,
    %c7_i32_160 = arith.constant 7 : i32
    %c8_i32_161 = arith.constant 8 : i32
    %427 = arith.muli %c7_i32_160, %c8_i32_161 : i32
    %428 = tpu.assume_multiple %427, 8 : i32
    %429 = arith.index_cast %428 : i32 to index
    %c0_162 = arith.constant 0 : index
    %430 = vector.load %arg10[%429, %c0_162] : memref<64x128xf32, #tpu.memory_space<vmem>>, vector<8x128xf32>
    %c0_163 = arith.constant 0 : index
    %c0_164 = arith.constant 0 : index
    %431 = vector.load %arg5[%c0_163, %c0_164] : memref<32x128xf32, #tpu.memory_space<vmem>>, vector<32x128xf32>
    %cst_165 = arith.constant dense<0.000000e+00> : vector<8x128xf32>
    %432 = tpu.matmul %424, %431, %cst_165 {dimension_numbers = #tpu.dot_dimension_numbers<[1], [0], [0], [1], [0, 0, 1, 1], [], []>} : vector<8x32xf32>, vector<32x128xf32>, vector<8x128xf32> -> vector<8x128xf32>
    %433 = arith.addf %430, %432 : vector<8x128xf32>
    %cst_166 = arith.constant 5.000000e-01 : f32
    %434 = vector.broadcast %cst_166 : f32 to vector<8x128xf32>
    %435 = arith.mulf %434, %433 : vector<8x128xf32>
    %436 = arith.select %5, %433, %435 : vector<8x128xi1>, vector<8x128xf32>
    %437 = math.tanh %436 : vector<8x128xf32>
    %cst_167 = arith.constant 1.000000e+00 : f32
    %438 = vector.broadcast %cst_167 : f32 to vector<8x128xf32>
    %439 = arith.addf %437, %438 : vector<8x128xf32>
    %cst_168 = arith.constant 5.000000e-01 : f32
    %440 = vector.broadcast %cst_168 : f32 to vector<8x128xf32>
    %441 = arith.mulf %440, %439 : vector<8x128xf32>
    %442 = arith.select %5, %437, %441 : vector<8x128xi1>, vector<8x128xf32>
    %443 = vector.extract_strided_slice %442 {offsets = [0, 0], sizes = [8, 32], strides = [1, 1]} : vector<8x128xf32> to vector<8x32xf32>
    %444 = vector.extract_strided_slice %442 {offsets = [0, 32], sizes = [8, 32], strides = [1, 1]} : vector<8x128xf32> to vector<8x32xf32>
    %445 = vector.extract_strided_slice %442 {offsets = [0, 64], sizes = [8, 32], strides = [1, 1]} : vector<8x128xf32> to vector<8x32xf32>
    %446 = vector.extract_strided_slice %442 {offsets = [0, 96], sizes = [8, 32], strides = [1, 1]} : vector<8x128xf32> to vector<8x32xf32>
    %447 = arith.mulf %444, %422 : vector<8x32xf32>
    %448 = arith.mulf %443, %445 : vector<8x32xf32>
    %449 = arith.addf %447, %448 : vector<8x32xf32>
    %450 = math.tanh %449 : vector<8x32xf32>
    %451 = arith.mulf %446, %450 : vector<8x32xf32>
    %452 = arith.index_cast %428 : i32 to index
    %c0_169 = arith.constant 0 : index
    %453 = vector.load %arg12[%452, %c0_169] : memref<64x32xf32, #tpu.memory_space<vmem>>, vector<8x32xf32>
    tpu.vector_store %arg12[%452, %c0_169], %451 {strides = array<i32>} : memref<64x32xf32, #tpu.memory_space<vmem>>, vector<8x32xf32>,
    %c8_i32_170 = arith.constant 8 : i32
    %c0_171 = arith.constant 0 : index
    %c0_172 = arith.constant 0 : index
    %454 = vector.load %arg12[%c0_171, %c0_172] : memref<64x32xf32, #tpu.memory_space<vmem>>, vector<64x32xf32>
    %c0_173 = arith.constant 0 : index
    %c0_174 = arith.constant 0 : index
    %455 = vector.load %arg7[%c0_173, %c0_174] : memref<32x128xf32, #tpu.memory_space<vmem>>, vector<32x128xf32>
    %cst_175 = arith.constant dense<0.000000e+00> : vector<64x128xf32>
    %456 = tpu.matmul %454, %455, %cst_175 {dimension_numbers = #tpu.dot_dimension_numbers<[1], [0], [0], [1], [0, 0, 1, 1], [], []>} : vector<64x32xf32>, vector<32x128xf32>, vector<64x128xf32> -> vector<64x128xf32>
    %c0_176 = arith.constant 0 : index
    %c0_177 = arith.constant 0 : index
    %457 = vector.load %arg8[%c0_176, %c0_177] : memref<1x128xf32, #tpu.memory_space<vmem>>, vector<1x128xf32>
    %458 = vector.broadcast %457 : vector<1x128xf32> to vector<64x128xf32>
    %459 = arith.addf %456, %458 : vector<64x128xf32>
    %c0_178 = arith.constant 0 : index
    %c0_179 = arith.constant 0 : index
    %460 = vector.load %arg9[%c0_178, %c0_179] : memref<64x128xf32, #tpu.memory_space<vmem>>, vector<64x128xf32>
    tpu.vector_store %arg9[%c0_178, %c0_179], %459 {strides = array<i32>} : memref<64x128xf32, #tpu.memory_space<vmem>>, vector<64x128xf32>,
    return
  }
}

</mosaic_0001>

<llo_original>
// kernel: rnn_forward.1
$region0: #{rnn_forward.1}
  #allocation0 [shape = 'u32[]', space=smem, size = 0x4, offset = 0x4, fixed_abs, tag = 'smem constant byte address 0x4 - core index']
  #allocation1 [shape = 'u32[72,128]{1,0:T(1,128)}', space=vmem, size = 0x9000, scoped, tag = 'internal scratch']
  #allocation2 [shape = 'f32[64,128]{1,0:T(8,128)}', space=vmem, size = 0x8000, scoped, tag = 'scratch operand']
  #allocation3 [shape = 'f32[64,32]{1,0:T(8,128)}', space=vmem, size = 0x8000, scoped, tag = 'scratch operand']
  #allocation4 [shape = 'f32[64,32]{1,0:T(8,128)}', space=vmem, size = 0x8000, scoped, tag = 'scratch operand']
  %s0 = inlined_call_operand.vmem [shape: f32[64,128], index: 0, kind: input, shape index: {}]
  %s1 = inlined_call_operand.vmem [shape: f32[128,128], index: 1, kind: input, shape index: {}]
  %s2 = inlined_call_operand.vmem [shape: f32[32,128], index: 2, kind: input, shape index: {}]
  %s3 = inlined_call_operand.vmem [shape: f32[1,128], index: 3, kind: input, shape index: {}]
  %s4 = inlined_call_operand.vmem [shape: f32[32,128], index: 4, kind: input, shape index: {}]
  %s5 = inlined_call_operand.vmem [shape: f32[32,128], index: 5, kind: input, shape index: {}]
  %s6 = inlined_call_operand.vmem [shape: f32[1,128], index: 6, kind: input, shape index: {}]
  %s7 = inlined_call_operand.vmem [shape: f32[32,128], index: 7, kind: input, shape index: {}]
  %s8 = inlined_call_operand.vmem [shape: f32[1,128], index: 8, kind: input, shape index: {}]
  %s9 = inlined_call_operand.vmem [shape: f32[64,128], index: 9, kind: output, shape index: {}]
  %s10 = sld [smem:[#allocation0]]
  $region46: #{rnn_forward.1} parent=0
    _
  %s12 = ssub.s32 1, %s10
  %s13 = scalar_select 0, %s12, %s10
  // Predicated region
  $region2: #{rnn_forward.1} parent=0 // pred_check
    _
  $region3: #{rnn_forward.1} parent=0 // pred_check_branch
    %15 = sbr.rel (0) target = $region5
  $region4: #{rnn_forward.1} parent=0 // pred_region
    _
  $region5: #{rnn_forward.1} parent=0 // pred_fallthru
    _
  // Predicated region
  $region6: #{rnn_forward.1} parent=0 // pred_check
    _
  $region7: #{rnn_forward.1} parent=0 // pred_check_branch
    %17 = sbr.rel (0) target = $region9
  $region8: #{rnn_forward.1} parent=0 // pred_region
    _
  $region9: #{rnn_forward.1} parent=0 // pred_fallthru
    _
  // Predicated region
  $region10: #{rnn_forward.1} parent=0 // pred_check
    _
  $region11: #{rnn_forward.1} parent=0 // pred_check_branch
    %19 = sbr.rel (0) target = $region13
  $region12: #{rnn_forward.1} parent=0 // pred_region
    _
  $region13: #{rnn_forward.1} parent=0 // pred_fallthru
    _
  // Predicated region
  $region14: #{rnn_forward.1} parent=0 // pred_check
    _
  $region15: #{rnn_forward.1} parent=0 // pred_check_branch
    %21 = sbr.rel (0) target = $region17
  $region16: #{rnn_forward.1} parent=0 // pred_region
    _
  $region17: #{rnn_forward.1} parent=0 // pred_fallthru
    _
  // Predicated region
  $region18: #{rnn_forward.1} parent=0 // pred_check
    _
  $region19: #{rnn_forward.1} parent=0 // pred_check_branch
    %23 = sbr.rel (0) target = $region21
  $region20: #{rnn_forward.1} parent=0 // pred_region
    _
  $region21: #{rnn_forward.1} parent=0 // pred_fallthru
    _
  // Predicated region
  $region22: #{rnn_forward.1} parent=0 // pred_check
    _
  $region23: #{rnn_forward.1} parent=0 // pred_check_branch
    %25 = sbr.rel (0) target = $region25
  $region24: #{rnn_forward.1} parent=0 // pred_region
    _
  $region25: #{rnn_forward.1} parent=0 // pred_fallthru
    _
  // Predicated region
  $region26: #{rnn_forward.1} parent=0 // pred_check
    _
  $region27: #{rnn_forward.1} parent=0 // pred_check_branch
    %27 = sbr.rel (0) target = $region29
  $region28: #{rnn_forward.1} parent=0 // pred_region
    _
  $region29: #{rnn_forward.1} parent=0 // pred_fallthru
    _
  // Predicated region
  $region30: #{rnn_forward.1} parent=0 // pred_check
    _
  $region31: #{rnn_forward.1} parent=0 // pred_check_branch
    %29 = sbr.rel (0) target = $region33
  $region32: #{rnn_forward.1} parent=0 // pred_region
    _
  $region33: #{rnn_forward.1} parent=0 // pred_fallthru
    _
  // Predicated region
  $region34: #{rnn_forward.1} parent=0 // pred_check
    _
  $region35: #{rnn_forward.1} parent=0 // pred_check_branch
    %31 = sbr.rel (0) target = $region37
  $region36: #{rnn_forward.1} parent=0 // pred_region
    _
  $region37: #{rnn_forward.1} parent=0 // pred_fallthru
    _
  %v32 = vlaneseq
  %v33 = vand.u32 %v32, 127
  %vm34 = vcmp.ge.s32.totalorder %v33, 64
  %vm35 = vcmp.lt.s32.totalorder %v33, 96
  %vm36 = vmand %vm34, %vm35
  %v37 = vld [vmem:[%s0] sm:$0xff]
  %v38 = vld [vmem:[%s0 + $0x8] sm:$0xff]
  %v39 = vld [vmem:[%s0 + $0x10] sm:$0xff]
  %v40 = vld [vmem:[%s0 + $0x18] sm:$0xff]
  %v41 = vld [vmem:[%s0 + $0x20] sm:$0xff]
  %v42 = vld [vmem:[%s0 + $0x28] sm:$0xff]
  %v43 = vld [vmem:[%s0 + $0x30] sm:$0xff]
  %v44 = vld [vmem:[%s0 + $0x38] sm:$0xff]
  %v45 = vld [vmem:[%s1] sm:$0xff]
  %v46 = vld [vmem:[%s1 + $0x8] sm:$0xff]
  %v47 = vld [vmem:[%s1 + $0x10] sm:$0xff]
  %v48 = vld [vmem:[%s1 + $0x18] sm:$0xff]
  %v49 = vld [vmem:[%s1 + $0x20] sm:$0xff]
  %v50 = vld [vmem:[%s1 + $0x28] sm:$0xff]
  %v51 = vld [vmem:[%s1 + $0x30] sm:$0xff]
  %v52 = vld [vmem:[%s1 + $0x38] sm:$0xff]
  %v53 = vld [vmem:[%s1 + $0x40] sm:$0xff]
  %v54 = vld [vmem:[%s1 + $0x48] sm:$0xff]
  %v55 = vld [vmem:[%s1 + $0x50] sm:$0xff]
  %v56 = vld [vmem:[%s1 + $0x58] sm:$0xff]
  %v57 = vld [vmem:[%s1 + $0x60] sm:$0xff]
  %v58 = vld [vmem:[%s1 + $0x68] sm:$0xff]
  %v59 = vld [vmem:[%s1 + $0x70] sm:$0xff]
  %v60 = vld [vmem:[%s1 + $0x78] sm:$0xff]
  %v61 = vld [vmem:[%s3] sm:$0x1]
  %v63 = vperm.slane %v61, 0
  %65 = vmatpush.msra.mxu0 %v60
  %66 = vmatpush.msra.mxu0 %v59
  %67 = vmatpush.msra.mxu0 %v58
  %68 = vmatpush.msra.mxu0 %v57
  %69 = vmatpush.msra.mxu0 %v56
  %70 = vmatpush.msra.mxu0 %v55
  %71 = vmatpush.msra.mxu0 %v54
  %72 = vmatpush.msra.mxu0 %v53
  %73 = vmatpush.msra.mxu0 %v52
  %74 = vmatpush.msra.mxu0 %v51
  %75 = vmatpush.msra.mxu0 %v50
  %76 = vmatpush.msra.mxu0 %v49
  %77 = vmatpush.msra.mxu0 %v48
  %78 = vmatpush.msra.mxu0 %v47
  %79 = vmatpush.msra.mxu0 %v46
  %80 = vmatpush.msra.mxu0 %v45
  %81 = vmatmul.f32.gmra.mxu0 %v37
  %v82 = vpop.f32.mrf.mxu0
  %v83 = vadd.f32 %v63, %v82
  %84 = vmatmul.f32.gmra.mxu0 %v38
  %v85 = vpop.f32.mrf.mxu0
  %v86 = vadd.f32 %v63, %v85
  %87 = vmatmul.f32.gmra.mxu0 %v39
  %v88 = vpop.f32.mrf.mxu0
  %v89 = vadd.f32 %v63, %v88
  %90 = vmatmul.f32.gmra.mxu0 %v40
  %v91 = vpop.f32.mrf.mxu0
  %v92 = vadd.f32 %v63, %v91
  %93 = vmatmul.f32.gmra.mxu0 %v41
  %v94 = vpop.f32.mrf.mxu0
  %v95 = vadd.f32 %v63, %v94
  %96 = vmatmul.f32.gmra.mxu0 %v42
  %v97 = vpop.f32.mrf.mxu0
  %v98 = vadd.f32 %v63, %v97
  %99 = vmatmul.f32.gmra.mxu0 %v43
  %v100 = vpop.f32.mrf.mxu0
  %v101 = vadd.f32 %v63, %v100
  %102 = vmatmul.f32.gmra.mxu0 %v44
  %v103 = vpop.f32.mrf.mxu0
  %v104 = vadd.f32 %v63, %v103
  %105 = vdwg.mxu0
  %106 = vst [vmem:[#allocation2] sm:$0xff] %v83
  %107 = vst [vmem:[#allocation2 + $0x8] sm:$0xff] %v86
  %108 = vst [vmem:[#allocation2 + $0x10] sm:$0xff] %v89
  %109 = vst [vmem:[#allocation2 + $0x18] sm:$0xff] %v92
  %110 = vst [vmem:[#allocation2 + $0x20] sm:$0xff] %v95
  %111 = vst [vmem:[#allocation2 + $0x28] sm:$0xff] %v98
  %112 = vst [vmem:[#allocation2 + $0x30] sm:$0xff] %v101
  %113 = vst [vmem:[#allocation2 + $0x38] sm:$0xff] %v104
  %v114 = vld [vmem:[#allocation2] sm:$0xff]
  %v115 = vld [vmem:[%s2] sm:$0xff]
  %v116 = vld [vmem:[%s2 + $0x8] sm:$0xff]
  %v117 = vld [vmem:[%s2 + $0x10] sm:$0xff]
  %v118 = vld [vmem:[%s2 + $0x18] sm:$0xff]
  %vm119 = vcmask 261120
  %v121 = vsel %vm119, 0.0, 0
  %123 = vmatpush.msra.mxu0 0.0
  %124 = vmatpush.msra.mxu0 0.0
  %125 = vmatpush.msra.mxu0 0.0
  %126 = vmatpush.msra.mxu0 0.0
  %127 = vmatpush.msra.mxu0 0.0
  %128 = vmatpush.msra.mxu0 0.0
  %129 = vmatpush.msra.mxu0 0.0
  %130 = vmatpush.msra.mxu0 0.0
  %131 = vmatpush.msra.mxu0 0.0
  %132 = vmatpush.msra.mxu0 0.0
  %133 = vmatpush.msra.mxu0 0.0
  %134 = vmatpush.msra.mxu0 0.0
  %135 = vmatpush.msra.mxu0 %v118
  %136 = vmatpush.msra.mxu0 %v117
  %137 = vmatpush.msra.mxu0 %v116
  %138 = vmatpush.msra.mxu0 %v115
  %139 = vmatmul.f32.gmra.mxu0 %v121
  %v140 = vpop.f32.mrf.mxu0
  %v141 = vadd.f32 0.0, %v140
  %142 = vdwg.mxu0
  %v143 = vadd.f32 %v114, %v141
  %v144 = vmul.f32 %v143, 0.5
  %v145 = vsel %vm36, %v143, %v144
  %v146 = vtanh.pop %v145
  %v147 = vadd.f32 %v146, 1.0
  %v148 = vmul.f32 %v147, 0.5
  %v149 = vsel %vm36, %v146, %v148
  %v150 = vmul.f32 %v149, 0.0
  %152 = vrot.lane.b32.xlu0 %v149, 64
  %v153 = vpop.permute.xlu0 %152
  %v155 = vmul.f32 %v149, %v153
  %157 = vrot.lane.b32.xlu0 %v155, 32
  %v158 = vpop.permute.xlu0 %157
  %v160 = vadd.f32 %v150, %v158
  %v161 = vtanh.pop %v160
  %163 = vrot.lane.b32.xlu0 %v161, 64
  %v164 = vpop.permute.xlu0 %163
  %v166 = vmul.f32 %v149, %v164
  %168 = vrot.lane.b32.xlu0 %v166, 32
  %v169 = vpop.permute.xlu0 %168
  %171 = vst.msk [vmem:[#allocation3] sm:$0xff] %vm119, %v169
  %s172 = scalar_lea.vmem [#allocation2], 8
  %v173 = vld [vmem:[%s172] sm:$0xff]
  %v174 = vld [vmem:[%s2] sm:$0xff]
  %v175 = vld [vmem:[%s2 + $0x8] sm:$0xff]
  %v176 = vld [vmem:[%s2 + $0x10] sm:$0xff]
  %v177 = vld [vmem:[%s2 + $0x18] sm:$0xff]
  %v178 = vsel %vm119, %v169, 0
  %180 = vmatpush.msra.mxu0 0.0
  %181 = vmatpush.msra.mxu0 0.0
  %182 = vmatpush.msra.mxu0 0.0
  %183 = vmatpush.msra.mxu0 0.0
  %184 = vmatpush.msra.mxu0 0.0
  %185 = vmatpush.msra.mxu0 0.0
  %186 = vmatpush.msra.mxu0 0.0
  %187 = vmatpush.msra.mxu0 0.0
  %188 = vmatpush.msra.mxu0 0.0
  %189 = vmatpush.msra.mxu0 0.0
  %190 = vmatpush.msra.mxu0 0.0
  %191 = vmatpush.msra.mxu0 0.0
  %192 = vmatpush.msra.mxu0 %v177
  %193 = vmatpush.msra.mxu0 %v176
  %194 = vmatpush.msra.mxu0 %v175
  %195 = vmatpush.msra.mxu0 %v174
  %196 = vmatmul.f32.gmra.mxu0 %v178
  %v197 = vpop.f32.mrf.mxu0
  %v198 = vadd.f32 0.0, %v197
  %199 = vdwg.mxu0
  %v200 = vadd.f32 %v173, %v198
  %v201 = vmul.f32 %v200, 0.5
  %v202 = vsel %vm36, %v200, %v201
  %v203 = vtanh.pop %v202
  %v204 = vadd.f32 %v203, 1.0
  %v205 = vmul.f32 %v204, 0.5
  %v206 = vsel %vm36, %v203, %v205
  %v207 = vmul.f32 %v206, %v160
  %209 = vrot.lane.b32.xlu0 %v206, 64
  %v210 = vpop.permute.xlu0 %209
  %v212 = vmul.f32 %v206, %v210
  %214 = vrot.lane.b32.xlu0 %v212, 32
  %v215 = vpop.permute.xlu0 %214
  %v217 = vadd.f32 %v207, %v215
  %v218 = vtanh.pop %v217
  %220 = vrot.lane.b32.xlu0 %v218, 64
  %v221 = vpop.permute.xlu0 %220
  %v223 = vmul.f32 %v206, %v221
  %225 = vrot.lane.b32.xlu0 %v223, 32
  %v226 = vpop.permute.xlu0 %225
  %s228 = scalar_lea.vmem [#allocation3], 8
  %229 = vst.msk [vmem:[%s228] sm:$0xff] %vm119, %v226
  %s230 = scalar_lea.vmem [#allocation2], 16
  %v231 = vld [vmem:[%s230] sm:$0xff]
  %v232 = vld [vmem:[%s2] sm:$0xff]
  %v233 = vld [vmem:[%s2 + $0x8] sm:$0xff]
  %v234 = vld [vmem:[%s2 + $0x10] sm:$0xff]
  %v235 = vld [vmem:[%s2 + $0x18] sm:$0xff]
  %v236 = vsel %vm119, %v226, 0
  %238 = vmatpush.msra.mxu0 0.0
  %239 = vmatpush.msra.mxu0 0.0
  %240 = vmatpush.msra.mxu0 0.0
  %241 = vmatpush.msra.mxu0 0.0
  %242 = vmatpush.msra.mxu0 0.0
  %243 = vmatpush.msra.mxu0 0.0
  %244 = vmatpush.msra.mxu0 0.0
  %245 = vmatpush.msra.mxu0 0.0
  %246 = vmatpush.msra.mxu0 0.0
  %247 = vmatpush.msra.mxu0 0.0
  %248 = vmatpush.msra.mxu0 0.0
  %249 = vmatpush.msra.mxu0 0.0
  %250 = vmatpush.msra.mxu0 %v235
  %251 = vmatpush.msra.mxu0 %v234
  %252 = vmatpush.msra.mxu0 %v233
  %253 = vmatpush.msra.mxu0 %v232
  %254 = vmatmul.f32.gmra.mxu0 %v236
  %v255 = vpop.f32.mrf.mxu0
  %v256 = vadd.f32 0.0, %v255
  %257 = vdwg.mxu0
  %v258 = vadd.f32 %v231, %v256
  %v259 = vmul.f32 %v258, 0.5
  %v260 = vsel %vm36, %v258, %v259
  %v261 = vtanh.pop %v260
  %v262 = vadd.f32 %v261, 1.0
  %v263 = vmul.f32 %v262, 0.5
  %v264 = vsel %vm36, %v261, %v263
  %v265 = vmul.f32 %v264, %v217
  %267 = vrot.lane.b32.xlu0 %v264, 64
  %v268 = vpop.permute.xlu0 %267
  %v270 = vmul.f32 %v264, %v268
  %272 = vrot.lane.b32.xlu0 %v270, 32
  %v273 = vpop.permute.xlu0 %272
  %v275 = vadd.f32 %v265, %v273
  %v276 = vtanh.pop %v275
  %278 = vrot.lane.b32.xlu0 %v276, 64
  %v279 = vpop.permute.xlu0 %278
  %v281 = vmul.f32 %v264, %v279
  %283 = vrot.lane.b32.xlu0 %v281, 32
  %v284 = vpop.permute.xlu0 %283
  %s286 = scalar_lea.vmem [#allocation3], 16
  %287 = vst.msk [vmem:[%s286] sm:$0xff] %vm119, %v284
  %s288 = scalar_lea.vmem [#allocation2], 24
  %v289 = vld [vmem:[%s288] sm:$0xff]
  %v290 = vld [vmem:[%s2] sm:$0xff]
  %v291 = vld [vmem:[%s2 + $0x8] sm:$0xff]
  %v292 = vld [vmem:[%s2 + $0x10] sm:$0xff]
  %v293 = vld [vmem:[%s2 + $0x18] sm:$0xff]
  %v294 = vsel %vm119, %v284, 0
  %296 = vmatpush.msra.mxu0 0.0
  %297 = vmatpush.msra.mxu0 0.0
  %298 = vmatpush.msra.mxu0 0.0
  %299 = vmatpush.msra.mxu0 0.0
  %300 = vmatpush.msra.mxu0 0.0
  %301 = vmatpush.msra.mxu0 0.0
  %302 = vmatpush.msra.mxu0 0.0
  %303 = vmatpush.msra.mxu0 0.0
  %304 = vmatpush.msra.mxu0 0.0
  %305 = vmatpush.msra.mxu0 0.0
  %306 = vmatpush.msra.mxu0 0.0
  %307 = vmatpush.msra.mxu0 0.0
  %308 = vmatpush.msra.mxu0 %v293
  %309 = vmatpush.msra.mxu0 %v292
  %310 = vmatpush.msra.mxu0 %v291
  %311 = vmatpush.msra.mxu0 %v290
  %312 = vmatmul.f32.gmra.mxu0 %v294
  %v313 = vpop.f32.mrf.mxu0
  %v314 = vadd.f32 0.0, %v313
  %315 = vdwg.mxu0
  %v316 = vadd.f32 %v289, %v314
  %v317 = vmul.f32 %v316, 0.5
  %v318 = vsel %vm36, %v316, %v317
  %v319 = vtanh.pop %v318
  %v320 = vadd.f32 %v319, 1.0
  %v321 = vmul.f32 %v320, 0.5
  %v322 = vsel %vm36, %v319, %v321
  %v323 = vmul.f32 %v322, %v275
  %325 = vrot.lane.b32.xlu0 %v322, 64
  %v326 = vpop.permute.xlu0 %325
  %v328 = vmul.f32 %v322, %v326
  %330 = vrot.lane.b32.xlu0 %v328, 32
  %v331 = vpop.permute.xlu0 %330
  %v333 = vadd.f32 %v323, %v331
  %v334 = vtanh.pop %v333
  %336 = vrot.lane.b32.xlu0 %v334, 64
  %v337 = vpop.permute.xlu0 %336
  %v339 = vmul.f32 %v322, %v337
  %341 = vrot.lane.b32.xlu0 %v339, 32
  %v342 = vpop.permute.xlu0 %341
  %s344 = scalar_lea.vmem [#allocation3], 24
  %345 = vst.msk [vmem:[%s344] sm:$0xff] %vm119, %v342
  %s346 = scalar_lea.vmem [#allocation2], 32
  %v347 = vld [vmem:[%s346] sm:$0xff]
  %v348 = vld [vmem:[%s2] sm:$0xff]
  %v349 = vld [vmem:[%s2 + $0x8] sm:$0xff]
  %v350 = vld [vmem:[%s2 + $0x10] sm:$0xff]
  %v351 = vld [vmem:[%s2 + $0x18] sm:$0xff]
  %v352 = vsel %vm119, %v342, 0
  %354 = vmatpush.msra.mxu0 0.0
  %355 = vmatpush.msra.mxu0 0.0
  %356 = vmatpush.msra.mxu0 0.0
  %357 = vmatpush.msra.mxu0 0.0
  %358 = vmatpush.msra.mxu0 0.0
  %359 = vmatpush.msra.mxu0 0.0
  %360 = vmatpush.msra.mxu0 0.0
  %361 = vmatpush.msra.mxu0 0.0
  %362 = vmatpush.msra.mxu0 0.0
  %363 = vmatpush.msra.mxu0 0.0
  %364 = vmatpush.msra.mxu0 0.0
  %365 = vmatpush.msra.mxu0 0.0
  %366 = vmatpush.msra.mxu0 %v351
  %367 = vmatpush.msra.mxu0 %v350
  %368 = vmatpush.msra.mxu0 %v349
  %369 = vmatpush.msra.mxu0 %v348
  %370 = vmatmul.f32.gmra.mxu0 %v352
  %v371 = vpop.f32.mrf.mxu0
  %v372 = vadd.f32 0.0, %v371
  %373 = vdwg.mxu0
  %v374 = vadd.f32 %v347, %v372
  %v375 = vmul.f32 %v374, 0.5
  %v376 = vsel %vm36, %v374, %v375
  %v377 = vtanh.pop %v376
  %v378 = vadd.f32 %v377, 1.0
  %v379 = vmul.f32 %v378, 0.5
  %v380 = vsel %vm36, %v377, %v379
  %v381 = vmul.f32 %v380, %v333
  %383 = vrot.lane.b32.xlu0 %v380, 64
  %v384 = vpop.permute.xlu0 %383
  %v386 = vmul.f32 %v380, %v384
  %388 = vrot.lane.b32.xlu0 %v386, 32
  %v389 = vpop.permute.xlu0 %388
  %v391 = vadd.f32 %v381, %v389
  %v392 = vtanh.pop %v391
  %394 = vrot.lane.b32.xlu0 %v392, 64
  %v395 = vpop.permute.xlu0 %394
  %v397 = vmul.f32 %v380, %v395
  %399 = vrot.lane.b32.xlu0 %v397, 32
  %v400 = vpop.permute.xlu0 %399
  %s402 = scalar_lea.vmem [#allocation3], 32
  %403 = vst.msk [vmem:[%s402] sm:$0xff] %vm119, %v400
  %s404 = scalar_lea.vmem [#allocation2], 40
  %v405 = vld [vmem:[%s404] sm:$0xff]
  %v406 = vld [vmem:[%s2] sm:$0xff]
  %v407 = vld [vmem:[%s2 + $0x8] sm:$0xff]
  %v408 = vld [vmem:[%s2 + $0x10] sm:$0xff]
  %v409 = vld [vmem:[%s2 + $0x18] sm:$0xff]
  %v410 = vsel %vm119, %v400, 0
  %412 = vmatpush.msra.mxu0 0.0
  %413 = vmatpush.msra.mxu0 0.0
  %414 = vmatpush.msra.mxu0 0.0
  %415 = vmatpush.msra.mxu0 0.0
  %416 = vmatpush.msra.mxu0 0.0
  %417 = vmatpush.msra.mxu0 0.0
  %418 = vmatpush.msra.mxu0 0.0
  %419 = vmatpush.msra.mxu0 0.0
  %420 = vmatpush.msra.mxu0 0.0
  %421 = vmatpush.msra.mxu0 0.0
  %422 = vmatpush.msra.mxu0 0.0
  %423 = vmatpush.msra.mxu0 0.0
  %424 = vmatpush.msra.mxu0 %v409
  %425 = vmatpush.msra.mxu0 %v408
  %426 = vmatpush.msra.mxu0 %v407
  %427 = vmatpush.msra.mxu0 %v406
  %428 = vmatmul.f32.gmra.mxu0 %v410
  %v429 = vpop.f32.mrf.mxu0
  %v430 = vadd.f32 0.0, %v429
  %431 = vdwg.mxu0
  %v432 = vadd.f32 %v405, %v430
  %v433 = vmul.f32 %v432, 0.5
  %v434 = vsel %vm36, %v432, %v433
  %v435 = vtanh.pop %v434
  %v436 = vadd.f32 %v435, 1.0
  %v437 = vmul.f32 %v436, 0.5
  %v438 = vsel %vm36, %v435, %v437
  %v439 = vmul.f32 %v438, %v391
  %441 = vrot.lane.b32.xlu0 %v438, 64
  %v442 = vpop.permute.xlu0 %441
  %v444 = vmul.f32 %v438, %v442
  %446 = vrot.lane.b32.xlu0 %v444, 32
  %v447 = vpop.permute.xlu0 %446
  %v449 = vadd.f32 %v439, %v447
  %v450 = vtanh.pop %v449
  %452 = vrot.lane.b32.xlu0 %v450, 64
  %v453 = vpop.permute.xlu0 %452
  %v455 = vmul.f32 %v438, %v453
  %457 = vrot.lane.b32.xlu0 %v455, 32
  %v458 = vpop.permute.xlu0 %457
  %s460 = scalar_lea.vmem [#allocation3], 40
  %461 = vst.msk [vmem:[%s460] sm:$0xff] %vm119, %v458
  %s462 = scalar_lea.vmem [#allocation2], 48
  %v463 = vld [vmem:[%s462] sm:$0xff]
  %v464 = vld [vmem:[%s2] sm:$0xff]
  %v465 = vld [vmem:[%s2 + $0x8] sm:$0xff]
  %v466 = vld [vmem:[%s2 + $0x10] sm:$0xff]
  %v467 = vld [vmem:[%s2 + $0x18] sm:$0xff]
  %v468 = vsel %vm119, %v458, 0
  %470 = vmatpush.msra.mxu0 0.0
  %471 = vmatpush.msra.mxu0 0.0
  %472 = vmatpush.msra.mxu0 0.0
  %473 = vmatpush.msra.mxu0 0.0
  %474 = vmatpush.msra.mxu0 0.0
  %475 = vmatpush.msra.mxu0 0.0
  %476 = vmatpush.msra.mxu0 0.0
  %477 = vmatpush.msra.mxu0 0.0
  %478 = vmatpush.msra.mxu0 0.0
  %479 = vmatpush.msra.mxu0 0.0
  %480 = vmatpush.msra.mxu0 0.0
  %481 = vmatpush.msra.mxu0 0.0
  %482 = vmatpush.msra.mxu0 %v467
  %483 = vmatpush.msra.mxu0 %v466
  %484 = vmatpush.msra.mxu0 %v465
  %485 = vmatpush.msra.mxu0 %v464
  %486 = vmatmul.f32.gmra.mxu0 %v468
  %v487 = vpop.f32.mrf.mxu0
  %v488 = vadd.f32 0.0, %v487
  %489 = vdwg.mxu0
  %v490 = vadd.f32 %v463, %v488
  %v491 = vmul.f32 %v490, 0.5
  %v492 = vsel %vm36, %v490, %v491
  %v493 = vtanh.pop %v492
  %v494 = vadd.f32 %v493, 1.0
  %v495 = vmul.f32 %v494, 0.5
  %v496 = vsel %vm36, %v493, %v495
  %v497 = vmul.f32 %v496, %v449
  %499 = vrot.lane.b32.xlu0 %v496, 64
  %v500 = vpop.permute.xlu0 %499
  %v502 = vmul.f32 %v496, %v500
  %504 = vrot.lane.b32.xlu0 %v502, 32
  %v505 = vpop.permute.xlu0 %504
  %v507 = vadd.f32 %v497, %v505
  %v508 = vtanh.pop %v507
  %510 = vrot.lane.b32.xlu0 %v508, 64
  %v511 = vpop.permute.xlu0 %510
  %v513 = vmul.f32 %v496, %v511
  %515 = vrot.lane.b32.xlu0 %v513, 32
  %v516 = vpop.permute.xlu0 %515
  %s518 = scalar_lea.vmem [#allocation3], 48
  %519 = vst.msk [vmem:[%s518] sm:$0xff] %vm119, %v516
  %s520 = scalar_lea.vmem [#allocation2], 56
  %v521 = vld [vmem:[%s520] sm:$0xff]
  %v522 = vld [vmem:[%s2] sm:$0xff]
  %v523 = vld [vmem:[%s2 + $0x8] sm:$0xff]
  %v524 = vld [vmem:[%s2 + $0x10] sm:$0xff]
  %v525 = vld [vmem:[%s2 + $0x18] sm:$0xff]
  %v526 = vsel %vm119, %v516, 0
  %528 = vmatpush.msra.mxu0 0.0
  %529 = vmatpush.msra.mxu0 0.0
  %530 = vmatpush.msra.mxu0 0.0
  %531 = vmatpush.msra.mxu0 0.0
  %532 = vmatpush.msra.mxu0 0.0
  %533 = vmatpush.msra.mxu0 0.0
  %534 = vmatpush.msra.mxu0 0.0
  %535 = vmatpush.msra.mxu0 0.0
  %536 = vmatpush.msra.mxu0 0.0
  %537 = vmatpush.msra.mxu0 0.0
  %538 = vmatpush.msra.mxu0 0.0
  %539 = vmatpush.msra.mxu0 0.0
  %540 = vmatpush.msra.mxu0 %v525
  %541 = vmatpush.msra.mxu0 %v524
  %542 = vmatpush.msra.mxu0 %v523
  %543 = vmatpush.msra.mxu0 %v522
  %544 = vmatmul.f32.gmra.mxu0 %v526
  %v545 = vpop.f32.mrf.mxu0
  %v546 = vadd.f32 0.0, %v545
  %547 = vdwg.mxu0
  %v548 = vadd.f32 %v521, %v546
  %v549 = vmul.f32 %v548, 0.5
  %v550 = vsel %vm36, %v548, %v549
  %v551 = vtanh.pop %v550
  %v552 = vadd.f32 %v551, 1.0
  %v553 = vmul.f32 %v552, 0.5
  %v554 = vsel %vm36, %v551, %v553
  %v555 = vmul.f32 %v554, %v507
  %557 = vrot.lane.b32.xlu0 %v554, 64
  %v558 = vpop.permute.xlu0 %557
  %v560 = vmul.f32 %v554, %v558
  %562 = vrot.lane.b32.xlu0 %v560, 32
  %v563 = vpop.permute.xlu0 %562
  %v565 = vadd.f32 %v555, %v563
  %v566 = vtanh.pop %v565
  %568 = vrot.lane.b32.xlu0 %v566, 64
  %v569 = vpop.permute.xlu0 %568
  %v571 = vmul.f32 %v554, %v569
  %573 = vrot.lane.b32.xlu0 %v571, 32
  %v574 = vpop.permute.xlu0 %573
  %s576 = scalar_lea.vmem [#allocation3], 56
  %577 = vst.msk [vmem:[%s576] sm:$0xff] %vm119, %v574
  %v578 = vld [vmem:[#allocation3] sm:$0xff]
  %v579 = vld [vmem:[#allocation3 + $0x8] sm:$0xff]
  %v580 = vld [vmem:[#allocation3 + $0x10] sm:$0xff]
  %v581 = vld [vmem:[#allocation3 + $0x18] sm:$0xff]
  %v582 = vld [vmem:[#allocation3 + $0x20] sm:$0xff]
  %v583 = vld [vmem:[#allocation3 + $0x28] sm:$0xff]
  %v584 = vld [vmem:[#allocation3 + $0x30] sm:$0xff]
  %v585 = vld [vmem:[#allocation3 + $0x38] sm:$0xff]
  %v586 = vld [vmem:[%s4] sm:$0xff]
  %v587 = vld [vmem:[%s4 + $0x8] sm:$0xff]
  %v588 = vld [vmem:[%s4 + $0x10] sm:$0xff]
  %v589 = vld [vmem:[%s4 + $0x18] sm:$0xff]
  %v590 = vld [vmem:[%s6] sm:$0x1]
  %v592 = vperm.slane %v590, 0
  %v595 = vsel %vm119, %v578, 0
  %v598 = vsel %vm119, %v579, 0
  %v601 = vsel %vm119, %v580, 0
  %v604 = vsel %vm119, %v581, 0
  %v607 = vsel %vm119, %v582, 0
  %v610 = vsel %vm119, %v583, 0
  %v613 = vsel %vm119, %v584, 0
  %v616 = vsel %vm119, %v585, 0
  %618 = vmatpush.msra.mxu0 0.0
  %619 = vmatpush.msra.mxu0 0.0
  %620 = vmatpush.msra.mxu0 0.0
  %621 = vmatpush.msra.mxu0 0.0
  %622 = vmatpush.msra.mxu0 0.0
  %623 = vmatpush.msra.mxu0 0.0
  %624 = vmatpush.msra.mxu0 0.0
  %625 = vmatpush.msra.mxu0 0.0
  %626 = vmatpush.msra.mxu0 0.0
  %627 = vmatpush.msra.mxu0 0.0
  %628 = vmatpush.msra.mxu0 0.0
  %629 = vmatpush.msra.mxu0 0.0
  %630 = vmatpush.msra.mxu0 %v589
  %631 = vmatpush.msra.mxu0 %v588
  %632 = vmatpush.msra.mxu0 %v587
  %633 = vmatpush.msra.mxu0 %v586
  %634 = vmatmul.f32.gmra.mxu0 %v595
  %v635 = vpop.f32.mrf.mxu0
  %v636 = vadd.f32 %v592, %v635
  %637 = vmatmul.f32.gmra.mxu0 %v598
  %v638 = vpop.f32.mrf.mxu0
  %v639 = vadd.f32 %v592, %v638
  %640 = vmatmul.f32.gmra.mxu0 %v601
  %v641 = vpop.f32.mrf.mxu0
  %v642 = vadd.f32 %v592, %v641
  %643 = vmatmul.f32.gmra.mxu0 %v604
  %v644 = vpop.f32.mrf.mxu0
  %v645 = vadd.f32 %v592, %v644
  %646 = vmatmul.f32.gmra.mxu0 %v607
  %v647 = vpop.f32.mrf.mxu0
  %v648 = vadd.f32 %v592, %v647
  %649 = vmatmul.f32.gmra.mxu0 %v610
  %v650 = vpop.f32.mrf.mxu0
  %v651 = vadd.f32 %v592, %v650
  %652 = vmatmul.f32.gmra.mxu0 %v613
  %v653 = vpop.f32.mrf.mxu0
  %v654 = vadd.f32 %v592, %v653
  %655 = vmatmul.f32.gmra.mxu0 %v616
  %v656 = vpop.f32.mrf.mxu0
  %v657 = vadd.f32 %v592, %v656
  %658 = vdwg.mxu0
  %659 = vst [vmem:[#allocation2] sm:$0xff] %v636
  %660 = vst [vmem:[#allocation2 + $0x8] sm:$0xff] %v639
  %661 = vst [vmem:[#allocation2 + $0x10] sm:$0xff] %v642
  %662 = vst [vmem:[#allocation2 + $0x18] sm:$0xff] %v645
  %663 = vst [vmem:[#allocation2 + $0x20] sm:$0xff] %v648
  %664 = vst [vmem:[#allocation2 + $0x28] sm:$0xff] %v651
  %665 = vst [vmem:[#allocation2 + $0x30] sm:$0xff] %v654
  %666 = vst [vmem:[#allocation2 + $0x38] sm:$0xff] %v657
  %v667 = vld [vmem:[#allocation2] sm:$0xff]
  %v668 = vld [vmem:[%s5] sm:$0xff]
  %v669 = vld [vmem:[%s5 + $0x8] sm:$0xff]
  %v670 = vld [vmem:[%s5 + $0x10] sm:$0xff]
  %v671 = vld [vmem:[%s5 + $0x18] sm:$0xff]
  %672 = vmatpush.msra.mxu0 0.0
  %673 = vmatpush.msra.mxu0 0.0
  %674 = vmatpush.msra.mxu0 0.0
  %675 = vmatpush.msra.mxu0 0.0
  %676 = vmatpush.msra.mxu0 0.0
  %677 = vmatpush.msra.mxu0 0.0
  %678 = vmatpush.msra.mxu0 0.0
  %679 = vmatpush.msra.mxu0 0.0
  %680 = vmatpush.msra.mxu0 0.0
  %681 = vmatpush.msra.mxu0 0.0
  %682 = vmatpush.msra.mxu0 0.0
  %683 = vmatpush.msra.mxu0 0.0
  %684 = vmatpush.msra.mxu0 %v671
  %685 = vmatpush.msra.mxu0 %v670
  %686 = vmatpush.msra.mxu0 %v669
  %687 = vmatpush.msra.mxu0 %v668
  %688 = vmatmul.f32.gmra.mxu0 %v121
  %v689 = vpop.f32.mrf.mxu0
  %v690 = vadd.f32 0.0, %v689
  %691 = vdwg.mxu0
  %v692 = vadd.f32 %v667, %v690
  %v693 = vmul.f32 %v692, 0.5
  %v694 = vsel %vm36, %v692, %v693
  %v695 = vtanh.pop %v694
  %v696 = vadd.f32 %v695, 1.0
  %v697 = vmul.f32 %v696, 0.5
  %v698 = vsel %vm36, %v695, %v697
  %v699 = vmul.f32 %v698, 0.0
  %701 = vrot.lane.b32.xlu0 %v698, 64
  %v702 = vpop.permute.xlu0 %701
  %v704 = vmul.f32 %v698, %v702
  %706 = vrot.lane.b32.xlu0 %v704, 32
  %v707 = vpop.permute.xlu0 %706
  %v709 = vadd.f32 %v699, %v707
  %v710 = vtanh.pop %v709
  %712 = vrot.lane.b32.xlu0 %v710, 64
  %v713 = vpop.permute.xlu0 %712
  %v715 = vmul.f32 %v698, %v713
  %717 = vrot.lane.b32.xlu0 %v715, 32
  %v718 = vpop.permute.xlu0 %717
  %720 = vst.msk [vmem:[#allocation4] sm:$0xff] %vm119, %v718
  %v721 = vld [vmem:[%s172] sm:$0xff]
  %v722 = vld [vmem:[%s5] sm:$0xff]
  %v723 = vld [vmem:[%s5 + $0x8] sm:$0xff]
  %v724 = vld [vmem:[%s5 + $0x10] sm:$0xff]
  %v725 = vld [vmem:[%s5 + $0x18] sm:$0xff]
  %v726 = vsel %vm119, %v718, 0
  %728 = vmatpush.msra.mxu0 0.0
  %729 = vmatpush.msra.mxu0 0.0
  %730 = vmatpush.msra.mxu0 0.0
  %731 = vmatpush.msra.mxu0 0.0
  %732 = vmatpush.msra.mxu0 0.0
  %733 = vmatpush.msra.mxu0 0.0
  %734 = vmatpush.msra.mxu0 0.0
  %735 = vmatpush.msra.mxu0 0.0
  %736 = vmatpush.msra.mxu0 0.0
  %737 = vmatpush.msra.mxu0 0.0
  %738 = vmatpush.msra.mxu0 0.0
  %739 = vmatpush.msra.mxu0 0.0
  %740 = vmatpush.msra.mxu0 %v725
  %741 = vmatpush.msra.mxu0 %v724
  %742 = vmatpush.msra.mxu0 %v723
  %743 = vmatpush.msra.mxu0 %v722
  %744 = vmatmul.f32.gmra.mxu0 %v726
  %v745 = vpop.f32.mrf.mxu0
  %v746 = vadd.f32 0.0, %v745
  %747 = vdwg.mxu0
  %v748 = vadd.f32 %v721, %v746
  %v749 = vmul.f32 %v748, 0.5
  %v750 = vsel %vm36, %v748, %v749
  %v751 = vtanh.pop %v750
  %v752 = vadd.f32 %v751, 1.0
  %v753 = vmul.f32 %v752, 0.5
  %v754 = vsel %vm36, %v751, %v753
  %v755 = vmul.f32 %v754, %v709
  %757 = vrot.lane.b32.xlu0 %v754, 64
  %v758 = vpop.permute.xlu0 %757
  %v760 = vmul.f32 %v754, %v758
  %762 = vrot.lane.b32.xlu0 %v760, 32
  %v763 = vpop.permute.xlu0 %762
  %v765 = vadd.f32 %v755, %v763
  %v766 = vtanh.pop %v765
  %768 = vrot.lane.b32.xlu0 %v766, 64
  %v769 = vpop.permute.xlu0 %768
  %v771 = vmul.f32 %v754, %v769
  %773 = vrot.lane.b32.xlu0 %v771, 32
  %v774 = vpop.permute.xlu0 %773
  %s776 = scalar_lea.vmem [#allocation4], 8
  %777 = vst.msk [vmem:[%s776] sm:$0xff] %vm119, %v774
  %v778 = vld [vmem:[%s230] sm:$0xff]
  %v779 = vld [vmem:[%s5] sm:$0xff]
  %v780 = vld [vmem:[%s5 + $0x8] sm:$0xff]
  %v781 = vld [vmem:[%s5 + $0x10] sm:$0xff]
  %v782 = vld [vmem:[%s5 + $0x18] sm:$0xff]
  %v783 = vsel %vm119, %v774, 0
  %785 = vmatpush.msra.mxu0 0.0
  %786 = vmatpush.msra.mxu0 0.0
  %787 = vmatpush.msra.mxu0 0.0
  %788 = vmatpush.msra.mxu0 0.0
  %789 = vmatpush.msra.mxu0 0.0
  %790 = vmatpush.msra.mxu0 0.0
  %791 = vmatpush.msra.mxu0 0.0
  %792 = vmatpush.msra.mxu0 0.0
  %793 = vmatpush.msra.mxu0 0.0
  %794 = vmatpush.msra.mxu0 0.0
  %795 = vmatpush.msra.mxu0 0.0
  %796 = vmatpush.msra.mxu0 0.0
  %797 = vmatpush.msra.mxu0 %v782
  %798 = vmatpush.msra.mxu0 %v781
  %799 = vmatpush.msra.mxu0 %v780
  %800 = vmatpush.msra.mxu0 %v779
  %801 = vmatmul.f32.gmra.mxu0 %v783
  %v802 = vpop.f32.mrf.mxu0
  %v803 = vadd.f32 0.0, %v802
  %804 = vdwg.mxu0
  %v805 = vadd.f32 %v778, %v803
  %v806 = vmul.f32 %v805, 0.5
  %v807 = vsel %vm36, %v805, %v806
  %v808 = vtanh.pop %v807
  %v809 = vadd.f32 %v808, 1.0
  %v810 = vmul.f32 %v809, 0.5
  %v811 = vsel %vm36, %v808, %v810
  %v812 = vmul.f32 %v811, %v765
  %814 = vrot.lane.b32.xlu0 %v811, 64
  %v815 = vpop.permute.xlu0 %814
  %v817 = vmul.f32 %v811, %v815
  %819 = vrot.lane.b32.xlu0 %v817, 32
  %v820 = vpop.permute.xlu0 %819
  %v822 = vadd.f32 %v812, %v820
  %v823 = vtanh.pop %v822
  %825 = vrot.lane.b32.xlu0 %v823, 64
  %v826 = vpop.permute.xlu0 %825
  %v828 = vmul.f32 %v811, %v826
  %830 = vrot.lane.b32.xlu0 %v828, 32
  %v831 = vpop.permute.xlu0 %830
  %s833 = scalar_lea.vmem [#allocation4], 16
  %834 = vst.msk [vmem:[%s833] sm:$0xff] %vm119, %v831
  %v835 = vld [vmem:[%s288] sm:$0xff]
  %v836 = vld [vmem:[%s5] sm:$0xff]
  %v837 = vld [vmem:[%s5 + $0x8] sm:$0xff]
  %v838 = vld [vmem:[%s5 + $0x10] sm:$0xff]
  %v839 = vld [vmem:[%s5 + $0x18] sm:$0xff]
  %v840 = vsel %vm119, %v831, 0
  %842 = vmatpush.msra.mxu0 0.0
  %843 = vmatpush.msra.mxu0 0.0
  %844 = vmatpush.msra.mxu0 0.0
  %845 = vmatpush.msra.mxu0 0.0
  %846 = vmatpush.msra.mxu0 0.0
  %847 = vmatpush.msra.mxu0 0.0
  %848 = vmatpush.msra.mxu0 0.0
  %849 = vmatpush.msra.mxu0 0.0
  %850 = vmatpush.msra.mxu0 0.0
  %851 = vmatpush.msra.mxu0 0.0
  %852 = vmatpush.msra.mxu0 0.0
  %853 = vmatpush.msra.mxu0 0.0
  %854 = vmatpush.msra.mxu0 %v839
  %855 = vmatpush.msra.mxu0 %v838
  %856 = vmatpush.msra.mxu0 %v837
  %857 = vmatpush.msra.mxu0 %v836
  %858 = vmatmul.f32.gmra.mxu0 %v840
  %v859 = vpop.f32.mrf.mxu0
  %v860 = vadd.f32 0.0, %v859
  %861 = vdwg.mxu0
  %v862 = vadd.f32 %v835, %v860
  %v863 = vmul.f32 %v862, 0.5
  %v864 = vsel %vm36, %v862, %v863
  %v865 = vtanh.pop %v864
  %v866 = vadd.f32 %v865, 1.0
  %v867 = vmul.f32 %v866, 0.5
  %v868 = vsel %vm36, %v865, %v867
  %v869 = vmul.f32 %v868, %v822
  %871 = vrot.lane.b32.xlu0 %v868, 64
  %v872 = vpop.permute.xlu0 %871
  %v874 = vmul.f32 %v868, %v872
  %876 = vrot.lane.b32.xlu0 %v874, 32
  %v877 = vpop.permute.xlu0 %876
  %v879 = vadd.f32 %v869, %v877
  %v880 = vtanh.pop %v879
  %882 = vrot.lane.b32.xlu0 %v880, 64
  %v883 = vpop.permute.xlu0 %882
  %v885 = vmul.f32 %v868, %v883
  %887 = vrot.lane.b32.xlu0 %v885, 32
  %v888 = vpop.permute.xlu0 %887
  %s890 = scalar_lea.vmem [#allocation4], 24
  %891 = vst.msk [vmem:[%s890] sm:$0xff] %vm119, %v888
  %v892 = vld [vmem:[%s346] sm:$0xff]
  %v893 = vld [vmem:[%s5] sm:$0xff]
  %v894 = vld [vmem:[%s5 + $0x8] sm:$0xff]
  %v895 = vld [vmem:[%s5 + $0x10] sm:$0xff]
  %v896 = vld [vmem:[%s5 + $0x18] sm:$0xff]
  %v897 = vsel %vm119, %v888, 0
  %899 = vmatpush.msra.mxu0 0.0
  %900 = vmatpush.msra.mxu0 0.0
  %901 = vmatpush.msra.mxu0 0.0
  %902 = vmatpush.msra.mxu0 0.0
  %903 = vmatpush.msra.mxu0 0.0
  %904 = vmatpush.msra.mxu0 0.0
  %905 = vmatpush.msra.mxu0 0.0
  %906 = vmatpush.msra.mxu0 0.0
  %907 = vmatpush.msra.mxu0 0.0
  %908 = vmatpush.msra.mxu0 0.0
  %909 = vmatpush.msra.mxu0 0.0
  %910 = vmatpush.msra.mxu0 0.0
  %911 = vmatpush.msra.mxu0 %v896
  %912 = vmatpush.msra.mxu0 %v895
  %913 = vmatpush.msra.mxu0 %v894
  %914 = vmatpush.msra.mxu0 %v893
  %915 = vmatmul.f32.gmra.mxu0 %v897
  %v916 = vpop.f32.mrf.mxu0
  %v917 = vadd.f32 0.0, %v916
  %918 = vdwg.mxu0
  %v919 = vadd.f32 %v892, %v917
  %v920 = vmul.f32 %v919, 0.5
  %v921 = vsel %vm36, %v919, %v920
  %v922 = vtanh.pop %v921
  %v923 = vadd.f32 %v922, 1.0
  %v924 = vmul.f32 %v923, 0.5
  %v925 = vsel %vm36, %v922, %v924
  %v926 = vmul.f32 %v925, %v879
  %928 = vrot.lane.b32.xlu0 %v925, 64
  %v929 = vpop.permute.xlu0 %928
  %v931 = vmul.f32 %v925, %v929
  %933 = vrot.lane.b32.xlu0 %v931, 32
  %v934 = vpop.permute.xlu0 %933
  %v936 = vadd.f32 %v926, %v934
  %v937 = vtanh.pop %v936
  %939 = vrot.lane.b32.xlu0 %v937, 64
  %v940 = vpop.permute.xlu0 %939
  %v942 = vmul.f32 %v925, %v940
  %944 = vrot.lane.b32.xlu0 %v942, 32
  %v945 = vpop.permute.xlu0 %944
  %s947 = scalar_lea.vmem [#allocation4], 32
  %948 = vst.msk [vmem:[%s947] sm:$0xff] %vm119, %v945
  %v949 = vld [vmem:[%s404] sm:$0xff]
  %v950 = vld [vmem:[%s5] sm:$0xff]
  %v951 = vld [vmem:[%s5 + $0x8] sm:$0xff]
  %v952 = vld [vmem:[%s5 + $0x10] sm:$0xff]
  %v953 = vld [vmem:[%s5 + $0x18] sm:$0xff]
  %v954 = vsel %vm119, %v945, 0
  %956 = vmatpush.msra.mxu0 0.0
  %957 = vmatpush.msra.mxu0 0.0
  %958 = vmatpush.msra.mxu0 0.0
  %959 = vmatpush.msra.mxu0 0.0
  %960 = vmatpush.msra.mxu0 0.0
  %961 = vmatpush.msra.mxu0 0.0
  %962 = vmatpush.msra.mxu0 0.0
  %963 = vmatpush.msra.mxu0 0.0
  %964 = vmatpush.msra.mxu0 0.0
  %965 = vmatpush.msra.mxu0 0.0
  %966 = vmatpush.msra.mxu0 0.0
  %967 = vmatpush.msra.mxu0 0.0
  %968 = vmatpush.msra.mxu0 %v953
  %969 = vmatpush.msra.mxu0 %v952
  %970 = vmatpush.msra.mxu0 %v951
  %971 = vmatpush.msra.mxu0 %v950
  %972 = vmatmul.f32.gmra.mxu0 %v954
  %v973 = vpop.f32.mrf.mxu0
  %v974 = vadd.f32 0.0, %v973
  %975 = vdwg.mxu0
  %v976 = vadd.f32 %v949, %v974
  %v977 = vmul.f32 %v976, 0.5
  %v978 = vsel %vm36, %v976, %v977
  %v979 = vtanh.pop %v978
  %v980 = vadd.f32 %v979, 1.0
  %v981 = vmul.f32 %v980, 0.5
  %v982 = vsel %vm36, %v979, %v981
  %v983 = vmul.f32 %v982, %v936
  %985 = vrot.lane.b32.xlu0 %v982, 64
  %v986 = vpop.permute.xlu0 %985
  %v988 = vmul.f32 %v982, %v986
  %990 = vrot.lane.b32.xlu0 %v988, 32
  %v991 = vpop.permute.xlu0 %990
  %v993 = vadd.f32 %v983, %v991
  %v994 = vtanh.pop %v993
  %996 = vrot.lane.b32.xlu0 %v994, 64
  %v997 = vpop.permute.xlu0 %996
  %v999 = vmul.f32 %v982, %v997
  %1001 = vrot.lane.b32.xlu0 %v999, 32
  %v1002 = vpop.permute.xlu0 %1001
  %s1004 = scalar_lea.vmem [#allocation4], 40
  %1005 = vst.msk [vmem:[%s1004] sm:$0xff] %vm119, %v1002
  %v1006 = vld [vmem:[%s462] sm:$0xff]
  %v1007 = vld [vmem:[%s5] sm:$0xff]
  %v1008 = vld [vmem:[%s5 + $0x8] sm:$0xff]
  %v1009 = vld [vmem:[%s5 + $0x10] sm:$0xff]
  %v1010 = vld [vmem:[%s5 + $0x18] sm:$0xff]
  %v1011 = vsel %vm119, %v1002, 0
  %1013 = vmatpush.msra.mxu0 0.0
  %1014 = vmatpush.msra.mxu0 0.0
  %1015 = vmatpush.msra.mxu0 0.0
  %1016 = vmatpush.msra.mxu0 0.0
  %1017 = vmatpush.msra.mxu0 0.0
  %1018 = vmatpush.msra.mxu0 0.0
  %1019 = vmatpush.msra.mxu0 0.0
  %1020 = vmatpush.msra.mxu0 0.0
  %1021 = vmatpush.msra.mxu0 0.0
  %1022 = vmatpush.msra.mxu0 0.0
  %1023 = vmatpush.msra.mxu0 0.0
  %1024 = vmatpush.msra.mxu0 0.0
  %1025 = vmatpush.msra.mxu0 %v1010
  %1026 = vmatpush.msra.mxu0 %v1009
  %1027 = vmatpush.msra.mxu0 %v1008
  %1028 = vmatpush.msra.mxu0 %v1007
  %1029 = vmatmul.f32.gmra.mxu0 %v1011
  %v1030 = vpop.f32.mrf.mxu0
  %v1031 = vadd.f32 0.0, %v1030
  %1032 = vdwg.mxu0
  %v1033 = vadd.f32 %v1006, %v1031
  %v1034 = vmul.f32 %v1033, 0.5
  %v1035 = vsel %vm36, %v1033, %v1034
  %v1036 = vtanh.pop %v1035
  %v1037 = vadd.f32 %v1036, 1.0
  %v1038 = vmul.f32 %v1037, 0.5
  %v1039 = vsel %vm36, %v1036, %v1038
  %v1040 = vmul.f32 %v1039, %v993
  %1042 = vrot.lane.b32.xlu0 %v1039, 64
  %v1043 = vpop.permute.xlu0 %1042
  %v1045 = vmul.f32 %v1039, %v1043
  %1047 = vrot.lane.b32.xlu0 %v1045, 32
  %v1048 = vpop.permute.xlu0 %1047
  %v1050 = vadd.f32 %v1040, %v1048
  %v1051 = vtanh.pop %v1050
  %1053 = vrot.lane.b32.xlu0 %v1051, 64
  %v1054 = vpop.permute.xlu0 %1053
  %v1056 = vmul.f32 %v1039, %v1054
  %1058 = vrot.lane.b32.xlu0 %v1056, 32
  %v1059 = vpop.permute.xlu0 %1058
  %s1061 = scalar_lea.vmem [#allocation4], 48
  %1062 = vst.msk [vmem:[%s1061] sm:$0xff] %vm119, %v1059
  %v1063 = vld [vmem:[%s520] sm:$0xff]
  %v1064 = vld [vmem:[%s5] sm:$0xff]
  %v1065 = vld [vmem:[%s5 + $0x8] sm:$0xff]
  %v1066 = vld [vmem:[%s5 + $0x10] sm:$0xff]
  %v1067 = vld [vmem:[%s5 + $0x18] sm:$0xff]
  %v1068 = vsel %vm119, %v1059, 0
  %1070 = vmatpush.msra.mxu0 0.0
  %1071 = vmatpush.msra.mxu0 0.0
  %1072 = vmatpush.msra.mxu0 0.0
  %1073 = vmatpush.msra.mxu0 0.0
  %1074 = vmatpush.msra.mxu0 0.0
  %1075 = vmatpush.msra.mxu0 0.0
  %1076 = vmatpush.msra.mxu0 0.0
  %1077 = vmatpush.msra.mxu0 0.0
  %1078 = vmatpush.msra.mxu0 0.0
  %1079 = vmatpush.msra.mxu0 0.0
  %1080 = vmatpush.msra.mxu0 0.0
  %1081 = vmatpush.msra.mxu0 0.0
  %1082 = vmatpush.msra.mxu0 %v1067
  %1083 = vmatpush.msra.mxu0 %v1066
  %1084 = vmatpush.msra.mxu0 %v1065
  %1085 = vmatpush.msra.mxu0 %v1064
  %1086 = vmatmul.f32.gmra.mxu0 %v1068
  %v1087 = vpop.f32.mrf.mxu0
  %v1088 = vadd.f32 0.0, %v1087
  %1089 = vdwg.mxu0
  %v1090 = vadd.f32 %v1063, %v1088
  %v1091 = vmul.f32 %v1090, 0.5
  %v1092 = vsel %vm36, %v1090, %v1091
  %v1093 = vtanh.pop %v1092
  %v1094 = vadd.f32 %v1093, 1.0
  %v1095 = vmul.f32 %v1094, 0.5
  %v1096 = vsel %vm36, %v1093, %v1095
  %v1097 = vmul.f32 %v1096, %v1050
  %1099 = vrot.lane.b32.xlu0 %v1096, 64
  %v1100 = vpop.permute.xlu0 %1099
  %v1102 = vmul.f32 %v1096, %v1100
  %1104 = vrot.lane.b32.xlu0 %v1102, 32
  %v1105 = vpop.permute.xlu0 %1104
  %v1107 = vadd.f32 %v1097, %v1105
  %v1108 = vtanh.pop %v1107
  %1110 = vrot.lane.b32.xlu0 %v1108, 64
  %v1111 = vpop.permute.xlu0 %1110
  %v1113 = vmul.f32 %v1096, %v1111
  %1115 = vrot.lane.b32.xlu0 %v1113, 32
  %v1116 = vpop.permute.xlu0 %1115
  %s1118 = scalar_lea.vmem [#allocation4], 56
  %1119 = vst.msk [vmem:[%s1118] sm:$0xff] %vm119, %v1116
  %v1120 = vld [vmem:[#allocation4] sm:$0xff]
  %v1121 = vld [vmem:[#allocation4 + $0x8] sm:$0xff]
  %v1122 = vld [vmem:[#allocation4 + $0x10] sm:$0xff]
  %v1123 = vld [vmem:[#allocation4 + $0x18] sm:$0xff]
  %v1124 = vld [vmem:[#allocation4 + $0x20] sm:$0xff]
  %v1125 = vld [vmem:[#allocation4 + $0x28] sm:$0xff]
  %v1126 = vld [vmem:[#allocation4 + $0x30] sm:$0xff]
  %v1127 = vld [vmem:[#allocation4 + $0x38] sm:$0xff]
  %v1128 = vld [vmem:[%s7] sm:$0xff]
  %v1129 = vld [vmem:[%s7 + $0x8] sm:$0xff]
  %v1130 = vld [vmem:[%s7 + $0x10] sm:$0xff]
  %v1131 = vld [vmem:[%s7 + $0x18] sm:$0xff]
  %v1132 = vld [vmem:[%s8] sm:$0x1]
  %v1134 = vperm.slane %v1132, 0
  %v1137 = vsel %vm119, %v1120, 0
  %v1140 = vsel %vm119, %v1121, 0
  %v1143 = vsel %vm119, %v1122, 0
  %v1146 = vsel %vm119, %v1123, 0
  %v1149 = vsel %vm119, %v1124, 0
  %v1152 = vsel %vm119, %v1125, 0
  %v1155 = vsel %vm119, %v1126, 0
  %v1158 = vsel %vm119, %v1127, 0
  %1160 = vmatpush.msra.mxu0 0.0
  %1161 = vmatpush.msra.mxu0 0.0
  %1162 = vmatpush.msra.mxu0 0.0
  %1163 = vmatpush.msra.mxu0 0.0
  %1164 = vmatpush.msra.mxu0 0.0
  %1165 = vmatpush.msra.mxu0 0.0
  %1166 = vmatpush.msra.mxu0 0.0
  %1167 = vmatpush.msra.mxu0 0.0
  %1168 = vmatpush.msra.mxu0 0.0
  %1169 = vmatpush.msra.mxu0 0.0
  %1170 = vmatpush.msra.mxu0 0.0
  %1171 = vmatpush.msra.mxu0 0.0
  %1172 = vmatpush.msra.mxu0 %v1131
  %1173 = vmatpush.msra.mxu0 %v1130
  %1174 = vmatpush.msra.mxu0 %v1129
  %1175 = vmatpush.msra.mxu0 %v1128
  %1176 = vmatmul.f32.gmra.mxu0 %v1137
  %v1177 = vpop.f32.mrf.mxu0
  %v1178 = vadd.f32 %v1134, %v1177
  %1179 = vmatmul.f32.gmra.mxu0 %v1140
  %v1180 = vpop.f32.mrf.mxu0
  %v1181 = vadd.f32 %v1134, %v1180
  %1182 = vmatmul.f32.gmra.mxu0 %v1143
  %v1183 = vpop.f32.mrf.mxu0
  %v1184 = vadd.f32 %v1134, %v1183
  %1185 = vmatmul.f32.gmra.mxu0 %v1146
  %v1186 = vpop.f32.mrf.mxu0
  %v1187 = vadd.f32 %v1134, %v1186
  %1188 = vmatmul.f32.gmra.mxu0 %v1149
  %v1189 = vpop.f32.mrf.mxu0
  %v1190 = vadd.f32 %v1134, %v1189
  %1191 = vmatmul.f32.gmra.mxu0 %v1152
  %v1192 = vpop.f32.mrf.mxu0
  %v1193 = vadd.f32 %v1134, %v1192
  %1194 = vmatmul.f32.gmra.mxu0 %v1155
  %v1195 = vpop.f32.mrf.mxu0
  %v1196 = vadd.f32 %v1134, %v1195
  %1197 = vmatmul.f32.gmra.mxu0 %v1158
  %v1198 = vpop.f32.mrf.mxu0
  %v1199 = vadd.f32 %v1134, %v1198
  %1200 = vdwg.mxu0
  %1201 = vst [vmem:[%s9] sm:$0xff] %v1178
  %1202 = vst [vmem:[%s9 + $0x8] sm:$0xff] %v1181
  %1203 = vst [vmem:[%s9 + $0x10] sm:$0xff] %v1184
  %1204 = vst [vmem:[%s9 + $0x18] sm:$0xff] %v1187
  %1205 = vst [vmem:[%s9 + $0x20] sm:$0xff] %v1190
  %1206 = vst [vmem:[%s9 + $0x28] sm:$0xff] %v1193
  %1207 = vst [vmem:[%s9 + $0x30] sm:$0xff] %v1196
  %1208 = vst [vmem:[%s9 + $0x38] sm:$0xff] %v1199
  // Predicated region
  $region38: #{rnn_forward.1} parent=0 // pred_check
    _
  $region39: #{rnn_forward.1} parent=0 // pred_check_branch
    %1210 = sbr.rel (0) target = $region41
  $region40: #{rnn_forward.1} parent=0 // pred_region
    _
  $region41: #{rnn_forward.1} parent=0 // pred_fallthru
    _
  // Predicated region
  $region42: #{rnn_forward.1} parent=0 // pred_check
    _
  $region43: #{rnn_forward.1} parent=0 // pred_check_branch
    %1212 = sbr.rel (0) target = $region45
  $region44: #{rnn_forward.1} parent=0 // pred_region
    _
  $region45: #{rnn_forward.1} parent=0 // pred_fallthru
    _

</llo_original>
